<compile_context>
chip_gen: v7x
topology: tpu7x:2x2x1
jax: 0.10.0
libtpu: 0.0.40
codegen_flags: <defaults>
</compile_context>

<pallas_src>
import functools

import jax
import jax.numpy as jnp
from jax import lax
from jax.experimental import pallas as pl
from jax.experimental.pallas import tpu as pltpu

EPS = 1e-5
# M-tile candidates: multiples of 16 so bf16 output blocks stay sublane-aligned.
_TM_CANDIDATES = (1024, 512, 256, 128, 64, 32, 16)


# ------------------------------ small helpers ------------------------------ #

def _round_up(x, m):
    return (x + m - 1) // m * m


def _pad_axis(a, axis, target):
    if a.shape[axis] == target:
        return a
    widths = [(0, 0)] * a.ndim
    widths[axis] = (0, target - a.shape[axis])
    return jnp.pad(a, widths)


def _pick_tile_m(m, row_bytes, budget):
    """Largest M tile (multiple of 16) whose double-buffered rows fit `budget`."""
    tm = _TM_CANDIDATES[-1]
    for cand in _TM_CANDIDATES:
        if 2 * cand * row_bytes <= budget:
            tm = cand
            break
    return min(tm, _round_up(m, 16))


# ----------------------------- Pallas kernels ------------------------------ #

def _conv_bn_relu_kernel(p_ref, w_ref, b_ref, o_ref):
    """relu(patches @ W' + b'); conv-bias + eval-mode BN pre-folded into W', b'."""
    acc = jnp.dot(p_ref[...], w_ref[...], preferred_element_type=jnp.float32)
    o_ref[...] = jnp.maximum(acc + b_ref[...], 0.0).astype(o_ref.dtype)


def _maxpool_kernel(win_ref, o_ref):
    """Max over the K*K stacked window taps (leading axis) for one M-tile."""
    o_ref[...] = jnp.max(win_ref[...], axis=0)


# ------------------------------ JAX glue ----------------------------------- #

def _im2col(x_nhwc, k, stride, pad):
    """Conv patches (M, k*k*C), feature order (kh, kw, c) with c fastest."""
    N, H, W, C = x_nhwc.shape
    xp = jnp.pad(x_nhwc, ((0, 0), (pad, pad), (pad, pad), (0, 0)))
    Ho = (H + 2 * pad - k) // stride + 1
    Wo = (W + 2 * pad - k) // stride + 1
    taps = [xp[:, kh:kh + stride * Ho:stride, kw:kw + stride * Wo:stride, :]
            for kh in range(k) for kw in range(k)]
    patches = jnp.concatenate(taps, axis=-1)                 # (N, Ho, Wo, k*k*C)
    return patches.reshape(N * Ho * Wo, k * k * C), (N, Ho, Wo)


def conv_bn_relu(x_nhwc, params, k, stride, pad,
                 compute_dtype=jnp.bfloat16, out_dtype=jnp.float32):
    """Fused Conv+BN(eval)+ReLU: folded-weight matmul streamed in M-row tiles."""
    w, b, gamma, beta, mean, var = params        # w: (k, k, Cin, Cout)
    cin, cout = w.shape[2], w.shape[3]

    # Fold conv bias + eval-mode BN into a single weight matrix and bias vector.
    scale = gamma * lax.rsqrt(var + EPS)                              # (Cout,)
    w_fold = (w * scale).reshape(k * k * cin, cout)
    b_fold = (b - mean) * scale + beta

    patches, (N, Ho, Wo) = _im2col(x_nhwc, k, stride, pad)
    M, Kdim = patches.shape

    # Lane/sublane alignment: Cout -> multiple of 128 (lane-dense MXU + unmasked
    # stores), Kdim -> multiple of 8 (sublane-aligned weight tile).
    Kp = _round_up(Kdim, 8)
    Cp = _round_up(cout, 128)
    in_bytes = jnp.dtype(compute_dtype).itemsize
    out_bytes = jnp.dtype(out_dtype).itemsize

    wmat = _pad_axis(_pad_axis(w_fold, 0, Kp), 1, Cp).astype(compute_dtype)
    bias = _pad_axis(b_fold, 0, Cp).reshape(1, Cp).astype(jnp.float32)
    patches = _pad_axis(patches, 1, Kp).astype(compute_dtype)

    # Tile over M so the patch matrix is streamed (never whole-resident in VMEM).
    # Budget ~10 MiB keeps the double-buffered working set safe on v5e (16 MiB
    # scoped default) and well under v7x's 64 MiB physical VMEM.
    static_bytes = Kp * Cp * in_bytes + Cp * 4        # resident weights + bias
    TM = _pick_tile_m(M, Kp * in_bytes + Cp * out_bytes,
                      budget=(10 << 20) - static_bytes)
    Mp = _round_up(M, TM)
    patches = _pad_axis(patches, 0, Mp)

    work = 2 * TM * (Kp * in_bytes + Cp * out_bytes) + 2 * static_bytes
    vmem_limit = int(min(max(3 * work, 8 << 20), 32 << 20))

    out = pl.pallas_call(
        _conv_bn_relu_kernel,
        out_shape=jax.ShapeDtypeStruct((Mp, Cp), out_dtype),
        grid=(Mp // TM,),
        in_specs=[pl.BlockSpec((TM, Kp), lambda i: (i, 0)),
                  pl.BlockSpec((Kp, Cp), lambda i: (0, 0)),
                  pl.BlockSpec((1, Cp), lambda i: (0, 0))],
        out_specs=pl.BlockSpec((TM, Cp), lambda i: (i, 0)),
        compiler_params=pltpu.CompilerParams(
            dimension_semantics=("parallel",),   # shard M tiles across v7x's 2 TCs
            vmem_limit_bytes=vmem_limit),
        cost_estimate=pl.CostEstimate(
            flops=2 * Mp * Kp * Cp,
            transcendentals=0,
            bytes_accessed=(Mp * Kp * in_bytes + Kp * Cp * in_bytes
                            + Cp * 4 + Mp * Cp * out_bytes)),
    )(patches, wmat, bias)
    return out[:M, :cout].reshape(N, Ho, Wo, cout)


def _pool_windows(x_nhwc, k, stride, pad):
    """Stack the k*k shifted/strided views for max pooling: (k*k, M, C)."""
    N, H, W, C = x_nhwc.shape
    neg = jnp.finfo(x_nhwc.dtype).min
    xp = jnp.pad(x_nhwc, ((0, 0), (pad, pad), (pad, pad), (0, 0)),
                 constant_values=neg)
    Ho = (H + 2 * pad - k) // stride + 1
    Wo = (W + 2 * pad - k) // stride + 1
    taps = [xp[:, kh:kh + stride * Ho:stride, kw:kw + stride * Wo:stride, :]
            for kh in range(k) for kw in range(k)]
    stacked = jnp.stack(taps, axis=0).reshape(k * k, N * Ho * Wo, C)
    return stacked, (N, Ho, Wo)


def maxpool(x_nhwc, k=3, stride=2, pad=1):
    # TODO(synk): the KxK window prestack still duplicates the input ~9x in HBM;
    # shifted-window reads of the NHWC activation would remove that traffic.
    stacked, (N, Ho, Wo) = _pool_windows(x_nhwc, k, stride, pad)
    KK, M, C = stacked.shape
    itemsize = jnp.dtype(x_nhwc.dtype).itemsize
    TM = _pick_tile_m(M, (KK + 1) * C * itemsize, budget=10 << 20)
    Mp = _round_up(M, TM)
    stacked = _pad_axis(stacked, 1, Mp)

    out = pl.pallas_call(
        _maxpool_kernel,
        out_shape=jax.ShapeDtypeStruct((Mp, C), x_nhwc.dtype),
        grid=(Mp // TM,),
        in_specs=[pl.BlockSpec((KK, TM, C), lambda i: (0, i, 0))],
        out_specs=pl.BlockSpec((TM, C), lambda i: (i, 0)),
        compiler_params=pltpu.CompilerParams(
            dimension_semantics=("parallel",)),
    )(stacked)
    return out[:M].reshape(N, Ho, Wo, C)


def inception_v3_module_d(x_nchw, params, compute_dtype=jnp.bfloat16):
    """Forward pass mirroring InceptionV3ModuleD.forward (output NCHW, f32)."""
    x = jnp.transpose(x_nchw, (0, 2, 3, 1))                    # NCHW -> NHWC
    inter = compute_dtype   # branch-internal activations stay in the MXU dtype
    # TODO(synk): fusing the 1x1 reduce conv into the following 3x3 kernel would
    # remove one full HBM round trip of the largest intermediate per branch.
    # branch1: 1x1 -> 3x3/s2
    b1 = conv_bn_relu(x, params['b1_1x1'], 1, 1, 0, compute_dtype, inter)
    b1 = conv_bn_relu(b1, params['b1_3x3'], 3, 2, 1, compute_dtype, jnp.float32)
    # branch2: 1x1 -> 3x3/s1 -> 3x3/s2
    b2 = conv_bn_relu(x, params['b2_1x1'], 1, 1, 0, compute_dtype, inter)
    b2 = conv_bn_relu(b2, params['b2_3x3a'], 3, 1, 1, compute_dtype, inter)
    b2 = conv_bn_relu(b2, params['b2_3x3b'], 3, 2, 1, compute_dtype, jnp.float32)
    # branch3: maxpool 3x3/s2
    b3 = maxpool(x, 3, 2, 1)
    out = jnp.concatenate([b1, b2, b3], axis=-1)               # channel concat
    return jnp.transpose(out, (0, 3, 1, 2))                    # NHWC -> NCHW


# --------------------------- parameter init -------------------------------- #

def init_conv_bn(key, cin, cout, k):
    kw_, kb, kg, kbe, km, kv = jax.random.split(key, 6)
    w = 0.1 * jax.random.normal(kw_, (k, k, cin, cout), jnp.float32)
    b = 0.05 * jax.random.normal(kb, (cout,), jnp.float32)
    gamma = 1.0 + 0.1 * jax.random.normal(kg, (cout,), jnp.float32)
    beta = 0.05 * jax.random.normal(kbe, (cout,), jnp.float32)
    mean = 0.05 * jax.random.normal(km, (cout,), jnp.float32)
    var = jax.random.uniform(kv, (cout,), jnp.float32, 0.5, 1.5)
    return (w, b, gamma, beta, mean, var)


# --------------------------- pure-JAX reference ----------------------------- #

def _ref_conv_bn_relu(x, params, stride, pad):
    w, b, gamma, beta, mean, var = params
    y = lax.conv_general_dilated(x, w, (stride, stride),
                                 [(pad, pad), (pad, pad)],
                                 dimension_numbers=('NHWC', 'HWIO', 'NHWC'))
    y = y + b
    y = gamma * (y - mean) * lax.rsqrt(var + EPS) + beta
    return jnp.maximum(y, 0.0)


def reference(x_nchw, params):
    x = jnp.transpose(x_nchw, (0, 2, 3, 1))
    b1 = _ref_conv_bn_relu(x, params['b1_1x1'], 1, 0)
    b1 = _ref_conv_bn_relu(b1, params['b1_3x3'], 2, 1)
    b2 = _ref_conv_bn_relu(x, params['b2_1x1'], 1, 0)
    b2 = _ref_conv_bn_relu(b2, params['b2_3x3a'], 1, 1)
    b2 = _ref_conv_bn_relu(b2, params['b2_3x3b'], 2, 1)
    neg = jnp.finfo(x.dtype).min
    b3 = lax.reduce_window(x, neg, lax.max, (1, 3, 3, 1), (1, 2, 2, 1),
                           [(0, 0), (1, 1), (1, 1), (0, 0)])
    out = jnp.concatenate([b1, b2, b3], axis=-1)
    return jnp.transpose(out, (0, 3, 1, 2))


# --------------------------------- main ------------------------------------ #

if __name__ == "__main__":
    key = jax.random.PRNGKey(0)
    keys = jax.random.split(key, 6)

    # small shapes consistent with the module
    N, Cin, H, W = 2, 4, 16, 16
    c1r, c1, c2r, c2 = 8, 8, 8, 8     # out_channels1reduce, out_channels1, ...

    params = {
        'b1_1x1':  init_conv_bn(keys[0], Cin, c1r, 1),
        'b1_3x3':  init_conv_bn(keys[1], c1r, c1, 3),
        'b2_1x1':  init_conv_bn(keys[2], Cin, c2r, 1),
        'b2_3x3a': init_conv_bn(keys[3], c2r, c2, 3),
        'b2_3x3b': init_conv_bn(keys[4], c2, c2, 3),
    }
    x = jax.random.normal(keys[5], (N, Cin, H, W), jnp.float32)

    ref = jax.block_until_ready(reference(x, params))

    # Exactness check: f32 MXU operands must match the unfused reference tightly
    # (folding BN into the weights is numerically equivalent to fp rounding).
    fwd_f32 = jax.jit(functools.partial(inception_v3_module_d,
                                        compute_dtype=jnp.float32))
    out_f32 = jax.block_until_ready(fwd_f32(x, params))
    assert out_f32.shape == (N, c1 + c2 + Cin, H // 2, W // 2), out_f32.shape
    err_f32 = jnp.max(jnp.abs(out_f32 - ref))
    assert jnp.allclose(out_f32, ref, atol=1e-4, rtol=1e-4), \
        f"f32 max abs err {err_f32}"

    # Production path: bf16 MXU operands / bf16 intermediates, f32 accumulation.
    # Looser tolerance reflects bf16 operand rounding only (accum stays f32).
    fwd_bf16 = jax.jit(functools.partial(inception_v3_module_d,
                                         compute_dtype=jnp.bfloat16))
    out_bf16 = jax.block_until_ready(fwd_bf16(x, params))
    assert out_bf16.shape == out_f32.shape, out_bf16.shape
    err_bf16 = jnp.max(jnp.abs(out_bf16 - ref))
    assert jnp.allclose(out_bf16, ref, atol=5e-2, rtol=5e-2), \
        f"bf16 max abs err {err_bf16}"

    print("KERNEL_OK")
</pallas_src>

<mosaic_0001>
module attributes {stable_mosaic.version = 11 : i64} {
  func.func @_conv_bn_relu_kernel(%arg0: i32, %arg1: memref<512x8xf32, #tpu.memory_space<vmem>>, %arg2: memref<8x128xf32, #tpu.memory_space<vmem>>, %arg3: memref<1x128xf32, #tpu.memory_space<vmem>>, %arg4: memref<512x128xf32, #tpu.memory_space<vmem>>) attributes {dimension_semantics = [#tpu.dimension_semantics<parallel>], iteration_bounds = array<i64: 1>, scalar_prefetch = 0 : i64, scratch_operands = 0 : i64, tpu.core_type = #tpu.core_type<tc>, window_params = [{transform_indices = @transform_0, window_bounds = array<i64: 512, 8>}, {pipeline_mode = #tpu.pipeline_mode<synchronous>, transform_indices = @transform_1, window_bounds = array<i64: 8, 128>}, {pipeline_mode = #tpu.pipeline_mode<synchronous>, transform_indices = @transform_2, window_bounds = array<i64: 1, 128>}, {transform_indices = @transform_3, window_bounds = array<i64: 512, 128>}]} {
    %c0 = arith.constant 0 : index
    %c0_0 = arith.constant 0 : index
    %0 = vector.load %arg1[%c0, %c0_0] : memref<512x8xf32, #tpu.memory_space<vmem>>, vector<512x8xf32>
    %c0_1 = arith.constant 0 : index
    %c0_2 = arith.constant 0 : index
    %1 = vector.load %arg2[%c0_1, %c0_2] : memref<8x128xf32, #tpu.memory_space<vmem>>, vector<8x128xf32>
    %cst = arith.constant dense<0.000000e+00> : vector<512x128xf32>
    %2 = tpu.matmul %0, %1, %cst {dimension_numbers = #tpu.dot_dimension_numbers<[1], [0], [0], [1], [0, 0, 1, 1], [], []>} : vector<512x8xf32>, vector<8x128xf32>, vector<512x128xf32> -> vector<512x128xf32>
    %c0_3 = arith.constant 0 : index
    %c0_4 = arith.constant 0 : index
    %3 = vector.load %arg3[%c0_3, %c0_4] : memref<1x128xf32, #tpu.memory_space<vmem>>, vector<1x128xf32>
    %4 = vector.broadcast %3 : vector<1x128xf32> to vector<512x128xf32>
    %5 = arith.addf %2, %4 : vector<512x128xf32>
    %cst_5 = arith.constant 0.000000e+00 : f32
    %6 = vector.broadcast %cst_5 : f32 to vector<512x128xf32>
    %7 = arith.maximumf %5, %6 : vector<512x128xf32>
    %c0_6 = arith.constant 0 : index
    %c0_7 = arith.constant 0 : index
    %8 = vector.load %arg4[%c0_6, %c0_7] : memref<512x128xf32, #tpu.memory_space<vmem>>, vector<512x128xf32>
    tpu.vector_store %arg4[%c0_6, %c0_7], %7 {strides = array<i32>} : memref<512x128xf32, #tpu.memory_space<vmem>>, vector<512x128xf32>,
    return
  }
  func.func @transform_0(%arg0: i32) -> (i32, i32) {
    %c0_i32 = arith.constant 0 : i32
    %c0_i32_0 = arith.constant 0 : i32
    return %arg0, %c0_i32 : i32, i32
  }
  func.func @transform_1(%arg0: i32) -> (i32, i32) {
    %c0_i32 = arith.constant 0 : i32
    %c0_i32_0 = arith.constant 0 : i32
    %c0_i32_1 = arith.constant 0 : i32
    return %c0_i32, %c0_i32_0 : i32, i32
  }
  func.func @transform_2(%arg0: i32) -> (i32, i32) {
    %c0_i32 = arith.constant 0 : i32
    %c0_i32_0 = arith.constant 0 : i32
    %c0_i32_1 = arith.constant 0 : i32
    return %c0_i32, %c0_i32_0 : i32, i32
  }
  func.func @transform_3(%arg0: i32) -> (i32, i32) {
    %c0_i32 = arith.constant 0 : i32
    %c0_i32_0 = arith.constant 0 : i32
    return %arg0, %c0_i32 : i32, i32
  }
}

module attributes {stable_mosaic.version = 11 : i64} {
  func.func @_conv_bn_relu_kernel(%arg0: i32, %arg1: memref<128x72xf32, #tpu.memory_space<vmem>>, %arg2: memref<72x128xf32, #tpu.memory_space<vmem>>, %arg3: memref<1x128xf32, #tpu.memory_space<vmem>>, %arg4: memref<128x128xf32, #tpu.memory_space<vmem>>) attributes {dimension_semantics = [#tpu.dimension_semantics<parallel>], iteration_bounds = array<i64: 1>, scalar_prefetch = 0 : i64, scratch_operands = 0 : i64, tpu.core_type = #tpu.core_type<tc>, window_params = [{transform_indices = @transform_0, window_bounds = array<i64: 128, 72>}, {pipeline_mode = #tpu.pipeline_mode<synchronous>, transform_indices = @transform_1, window_bounds = array<i64: 72, 128>}, {pipeline_mode = #tpu.pipeline_mode<synchronous>, transform_indices = @transform_2, window_bounds = array<i64: 1, 128>}, {transform_indices = @transform_3, window_bounds = array<i64: 128, 128>}]} {
    %c0 = arith.constant 0 : index
    %c0_0 = arith.constant 0 : index
    %0 = vector.load %arg1[%c0, %c0_0] : memref<128x72xf32, #tpu.memory_space<vmem>>, vector<128x72xf32>
    %c0_1 = arith.constant 0 : index
    %c0_2 = arith.constant 0 : index
    %1 = vector.load %arg2[%c0_1, %c0_2] : memref<72x128xf32, #tpu.memory_space<vmem>>, vector<72x128xf32>
    %cst = arith.constant dense<0.000000e+00> : vector<128x128xf32>
    %2 = tpu.matmul %0, %1, %cst {dimension_numbers = #tpu.dot_dimension_numbers<[1], [0], [0], [1], [0, 0, 1, 1], [], []>} : vector<128x72xf32>, vector<72x128xf32>, vector<128x128xf32> -> vector<128x128xf32>
    %c0_3 = arith.constant 0 : index
    %c0_4 = arith.constant 0 : index
    %3 = vector.load %arg3[%c0_3, %c0_4] : memref<1x128xf32, #tpu.memory_space<vmem>>, vector<1x128xf32>
    %4 = vector.broadcast %3 : vector<1x128xf32> to vector<128x128xf32>
    %5 = arith.addf %2, %4 : vector<128x128xf32>
    %cst_5 = arith.constant 0.000000e+00 : f32
    %6 = vector.broadcast %cst_5 : f32 to vector<128x128xf32>
    %7 = arith.maximumf %5, %6 : vector<128x128xf32>
    %c0_6 = arith.constant 0 : index
    %c0_7 = arith.constant 0 : index
    %8 = vector.load %arg4[%c0_6, %c0_7] : memref<128x128xf32, #tpu.memory_space<vmem>>, vector<128x128xf32>
    tpu.vector_store %arg4[%c0_6, %c0_7], %7 {strides = array<i32>} : memref<128x128xf32, #tpu.memory_space<vmem>>, vector<128x128xf32>,
    return
  }
  func.func @transform_0(%arg0: i32) -> (i32, i32) {
    %c0_i32 = arith.constant 0 : i32
    %c0_i32_0 = arith.constant 0 : i32
    return %arg0, %c0_i32 : i32, i32
  }
  func.func @transform_1(%arg0: i32) -> (i32, i32) {
    %c0_i32 = arith.constant 0 : i32
    %c0_i32_0 = arith.constant 0 : i32
    %c0_i32_1 = arith.constant 0 : i32
    return %c0_i32, %c0_i32_0 : i32, i32
  }
  func.func @transform_2(%arg0: i32) -> (i32, i32) {
    %c0_i32 = arith.constant 0 : i32
    %c0_i32_0 = arith.constant 0 : i32
    %c0_i32_1 = arith.constant 0 : i32
    return %c0_i32, %c0_i32_0 : i32, i32
  }
  func.func @transform_3(%arg0: i32) -> (i32, i32) {
    %c0_i32 = arith.constant 0 : i32
    %c0_i32_0 = arith.constant 0 : i32
    return %arg0, %c0_i32 : i32, i32
  }
}

module attributes {stable_mosaic.version = 11 : i64} {
  func.func @_maxpool_kernel(%arg0: i32, %arg1: memref<9x128x4xf32, #tpu.memory_space<vmem>>, %arg2: memref<128x4xf32, #tpu.memory_space<vmem>>) attributes {dimension_semantics = [#tpu.dimension_semantics<parallel>], iteration_bounds = array<i64: 1>, scalar_prefetch = 0 : i64, scratch_operands = 0 : i64, tpu.core_type = #tpu.core_type<tc>, window_params = [{transform_indices = @transform_0, window_bounds = array<i64: 9, 128, 4>}, {transform_indices = @transform_1, window_bounds = array<i64: 128, 4>}]} {
    %c0 = arith.constant 0 : index
    %c0_0 = arith.constant 0 : index
    %c0_1 = arith.constant 0 : index
    %0 = vector.load %arg1[%c0, %c0_0, %c0_1] : memref<9x128x4xf32, #tpu.memory_space<vmem>>, vector<9x128x4xf32>
    %cst = arith.constant dense<0xFF800000> : vector<128x4xf32>
    %1 = vector.multi_reduction <maximumf>, %0, %cst [0] : vector<9x128x4xf32> to vector<128x4xf32>
    %c0_2 = arith.constant 0 : index
    %c0_3 = arith.constant 0 : index
    %2 = vector.load %arg2[%c0_2, %c0_3] : memref<128x4xf32, #tpu.memory_space<vmem>>, vector<128x4xf32>
    tpu.vector_store %arg2[%c0_2, %c0_3], %1 {strides = array<i32>} : memref<128x4xf32, #tpu.memory_space<vmem>>, vector<128x4xf32>,
    return
  }
  func.func @transform_0(%arg0: i32) -> (i32, i32, i32) {
    %c0_i32 = arith.constant 0 : i32
    %c0_i32_0 = arith.constant 0 : i32
    %c0_i32_1 = arith.constant 0 : i32
    return %c0_i32, %arg0, %c0_i32_0 : i32, i32, i32
  }
  func.func @transform_1(%arg0: i32) -> (i32, i32) {
    %c0_i32 = arith.constant 0 : i32
    %c0_i32_0 = arith.constant 0 : i32
    return %arg0, %c0_i32 : i32, i32
  }
}

module attributes {stable_mosaic.version = 11 : i64} {
  func.func @_conv_bn_relu_kernel(%arg0: i32, %arg1: memref<512x72xf32, #tpu.memory_space<vmem>>, %arg2: memref<72x128xf32, #tpu.memory_space<vmem>>, %arg3: memref<1x128xf32, #tpu.memory_space<vmem>>, %arg4: memref<512x128xf32, #tpu.memory_space<vmem>>) attributes {dimension_semantics = [#tpu.dimension_semantics<parallel>], iteration_bounds = array<i64: 1>, scalar_prefetch = 0 : i64, scratch_operands = 0 : i64, tpu.core_type = #tpu.core_type<tc>, window_params = [{transform_indices = @transform_0, window_bounds = array<i64: 512, 72>}, {pipeline_mode = #tpu.pipeline_mode<synchronous>, transform_indices = @transform_1, window_bounds = array<i64: 72, 128>}, {pipeline_mode = #tpu.pipeline_mode<synchronous>, transform_indices = @transform_2, window_bounds = array<i64: 1, 128>}, {transform_indices = @transform_3, window_bounds = array<i64: 512, 128>}]} {
    %c0 = arith.constant 0 : index
    %c0_0 = arith.constant 0 : index
    %0 = vector.load %arg1[%c0, %c0_0] : memref<512x72xf32, #tpu.memory_space<vmem>>, vector<512x72xf32>
    %c0_1 = arith.constant 0 : index
    %c0_2 = arith.constant 0 : index
    %1 = vector.load %arg2[%c0_1, %c0_2] : memref<72x128xf32, #tpu.memory_space<vmem>>, vector<72x128xf32>
    %cst = arith.constant dense<0.000000e+00> : vector<512x128xf32>
    %2 = tpu.matmul %0, %1, %cst {dimension_numbers = #tpu.dot_dimension_numbers<[1], [0], [0], [1], [0, 0, 1, 1], [], []>} : vector<512x72xf32>, vector<72x128xf32>, vector<512x128xf32> -> vector<512x128xf32>
    %c0_3 = arith.constant 0 : index
    %c0_4 = arith.constant 0 : index
    %3 = vector.load %arg3[%c0_3, %c0_4] : memref<1x128xf32, #tpu.memory_space<vmem>>, vector<1x128xf32>
    %4 = vector.broadcast %3 : vector<1x128xf32> to vector<512x128xf32>
    %5 = arith.addf %2, %4 : vector<512x128xf32>
    %cst_5 = arith.constant 0.000000e+00 : f32
    %6 = vector.broadcast %cst_5 : f32 to vector<512x128xf32>
    %7 = arith.maximumf %5, %6 : vector<512x128xf32>
    %c0_6 = arith.constant 0 : index
    %c0_7 = arith.constant 0 : index
    %8 = vector.load %arg4[%c0_6, %c0_7] : memref<512x128xf32, #tpu.memory_space<vmem>>, vector<512x128xf32>
    tpu.vector_store %arg4[%c0_6, %c0_7], %7 {strides = array<i32>} : memref<512x128xf32, #tpu.memory_space<vmem>>, vector<512x128xf32>,
    return
  }
  func.func @transform_0(%arg0: i32) -> (i32, i32) {
    %c0_i32 = arith.constant 0 : i32
    %c0_i32_0 = arith.constant 0 : i32
    return %arg0, %c0_i32 : i32, i32
  }
  func.func @transform_1(%arg0: i32) -> (i32, i32) {
    %c0_i32 = arith.constant 0 : i32
    %c0_i32_0 = arith.constant 0 : i32
    %c0_i32_1 = arith.constant 0 : i32
    return %c0_i32, %c0_i32_0 : i32, i32
  }
  func.func @transform_2(%arg0: i32) -> (i32, i32) {
    %c0_i32 = arith.constant 0 : i32
    %c0_i32_0 = arith.constant 0 : i32
    %c0_i32_1 = arith.constant 0 : i32
    return %c0_i32, %c0_i32_0 : i32, i32
  }
  func.func @transform_3(%arg0: i32) -> (i32, i32) {
    %c0_i32 = arith.constant 0 : i32
    %c0_i32_0 = arith.constant 0 : i32
    return %arg0, %c0_i32 : i32, i32
  }
}

</mosaic_0001>

<llo_original>
// kernel: inception_v3_module_d.8
$region0: #{inception_v3_module_d.8}
  #allocation0 [shape = 'u32[]', space=smem, size = 0x4, offset = 0x4, fixed_abs, tag = 'smem constant byte address 0x4 - core index']
  #allocation1 [shape = 'u32[144,128]{1,0:T(1,128)}', space=vmem, size = 0x12000, scoped, tag = 'internal scratch']
  %s0 = inlined_call_operand.vmem [shape: f32[512,8], index: 0, kind: input, shape index: {}]
  %s1 = inlined_call_operand.vmem [shape: f32[8,128], index: 1, kind: input, shape index: {}]
  %s2 = inlined_call_operand.vmem [shape: f32[1,128], index: 2, kind: input, shape index: {}]
  %s3 = inlined_call_operand.vmem [shape: f32[512,128], index: 3, kind: output, shape index: {}]
  %s4 = sld [smem:[#allocation0]]
  $region22: #{inception_v3_module_d.8} parent=0
    _
  %s6 = ssub.s32 1, %s4
  %s7 = scalar_select 0, %s6, %s4
  // Predicated region
  $region2: #{inception_v3_module_d.8} parent=0 // pred_check
    _
  $region3: #{inception_v3_module_d.8} parent=0 // pred_check_branch
    %9 = sbr.rel (0) target = $region5
  $region4: #{inception_v3_module_d.8} parent=0 // pred_region
    _
  $region5: #{inception_v3_module_d.8} parent=0 // pred_fallthru
    _
  // Predicated region
  $region6: #{inception_v3_module_d.8} parent=0 // pred_check
    _
  $region7: #{inception_v3_module_d.8} parent=0 // pred_check_branch
    %11 = sbr.rel (0) target = $region9
  $region8: #{inception_v3_module_d.8} parent=0 // pred_region
    _
  $region9: #{inception_v3_module_d.8} parent=0 // pred_fallthru
    _
  // Predicated region
  $region10: #{inception_v3_module_d.8} parent=0 // pred_check
    _
  $region11: #{inception_v3_module_d.8} parent=0 // pred_check_branch
    %13 = sbr.rel (0) target = $region13
  $region12: #{inception_v3_module_d.8} parent=0 // pred_region
    _
  $region13: #{inception_v3_module_d.8} parent=0 // pred_fallthru
    _
  %v14 = vld [vmem:[%s0] sm:$0xff]
  %v15 = vld [vmem:[%s0 + $0x8] sm:$0xff]
  %v16 = vld [vmem:[%s0 + $0x10] sm:$0xff]
  %v17 = vld [vmem:[%s0 + $0x18] sm:$0xff]
  %v18 = vld [vmem:[%s0 + $0x20] sm:$0xff]
  %v19 = vld [vmem:[%s0 + $0x28] sm:$0xff]
  %v20 = vld [vmem:[%s0 + $0x30] sm:$0xff]
  %v21 = vld [vmem:[%s0 + $0x38] sm:$0xff]
  %v22 = vld [vmem:[%s0 + $0x40] sm:$0xff]
  %v23 = vld [vmem:[%s0 + $0x48] sm:$0xff]
  %v24 = vld [vmem:[%s0 + $0x50] sm:$0xff]
  %v25 = vld [vmem:[%s0 + $0x58] sm:$0xff]
  %v26 = vld [vmem:[%s0 + $0x60] sm:$0xff]
  %v27 = vld [vmem:[%s0 + $0x68] sm:$0xff]
  %v28 = vld [vmem:[%s0 + $0x70] sm:$0xff]
  %v29 = vld [vmem:[%s0 + $0x78] sm:$0xff]
  %v30 = vld [vmem:[%s0 + $0x80] sm:$0xff]
  %v31 = vld [vmem:[%s0 + $0x88] sm:$0xff]
  %v32 = vld [vmem:[%s0 + $0x90] sm:$0xff]
  %v33 = vld [vmem:[%s0 + $0x98] sm:$0xff]
  %v34 = vld [vmem:[%s0 + $0xa0] sm:$0xff]
  %v35 = vld [vmem:[%s0 + $0xa8] sm:$0xff]
  %v36 = vld [vmem:[%s0 + $0xb0] sm:$0xff]
  %v37 = vld [vmem:[%s0 + $0xb8] sm:$0xff]
  %v38 = vld [vmem:[%s0 + $0xc0] sm:$0xff]
  %v39 = vld [vmem:[%s0 + $0xc8] sm:$0xff]
  %v40 = vld [vmem:[%s0 + $0xd0] sm:$0xff]
  %v41 = vld [vmem:[%s0 + $0xd8] sm:$0xff]
  %v42 = vld [vmem:[%s0 + $0xe0] sm:$0xff]
  %v43 = vld [vmem:[%s0 + $0xe8] sm:$0xff]
  %v44 = vld [vmem:[%s0 + $0xf0] sm:$0xff]
  %v45 = vld [vmem:[%s0 + $0xf8] sm:$0xff]
  %v46 = vld [vmem:[%s0 + $0x100] sm:$0xff]
  %v47 = vld [vmem:[%s0 + $0x108] sm:$0xff]
  %v48 = vld [vmem:[%s0 + $0x110] sm:$0xff]
  %v49 = vld [vmem:[%s0 + $0x118] sm:$0xff]
  %v50 = vld [vmem:[%s0 + $0x120] sm:$0xff]
  %v51 = vld [vmem:[%s0 + $0x128] sm:$0xff]
  %v52 = vld [vmem:[%s0 + $0x130] sm:$0xff]
  %v53 = vld [vmem:[%s0 + $0x138] sm:$0xff]
  %v54 = vld [vmem:[%s0 + $0x140] sm:$0xff]
  %v55 = vld [vmem:[%s0 + $0x148] sm:$0xff]
  %v56 = vld [vmem:[%s0 + $0x150] sm:$0xff]
  %v57 = vld [vmem:[%s0 + $0x158] sm:$0xff]
  %v58 = vld [vmem:[%s0 + $0x160] sm:$0xff]
  %v59 = vld [vmem:[%s0 + $0x168] sm:$0xff]
  %v60 = vld [vmem:[%s0 + $0x170] sm:$0xff]
  %v61 = vld [vmem:[%s0 + $0x178] sm:$0xff]
  %v62 = vld [vmem:[%s0 + $0x180] sm:$0xff]
  %v63 = vld [vmem:[%s0 + $0x188] sm:$0xff]
  %v64 = vld [vmem:[%s0 + $0x190] sm:$0xff]
  %v65 = vld [vmem:[%s0 + $0x198] sm:$0xff]
  %v66 = vld [vmem:[%s0 + $0x1a0] sm:$0xff]
  %v67 = vld [vmem:[%s0 + $0x1a8] sm:$0xff]
  %v68 = vld [vmem:[%s0 + $0x1b0] sm:$0xff]
  %v69 = vld [vmem:[%s0 + $0x1b8] sm:$0xff]
  %v70 = vld [vmem:[%s0 + $0x1c0] sm:$0xff]
  %v71 = vld [vmem:[%s0 + $0x1c8] sm:$0xff]
  %v72 = vld [vmem:[%s0 + $0x1d0] sm:$0xff]
  %v73 = vld [vmem:[%s0 + $0x1d8] sm:$0xff]
  %v74 = vld [vmem:[%s0 + $0x1e0] sm:$0xff]
  %v75 = vld [vmem:[%s0 + $0x1e8] sm:$0xff]
  %v76 = vld [vmem:[%s0 + $0x1f0] sm:$0xff]
  %v77 = vld [vmem:[%s0 + $0x1f8] sm:$0xff]
  %v78 = vld [vmem:[%s1] sm:$0xff]
  %v79 = vld [vmem:[%s2] sm:$0x1]
  %v81 = vlaneseq
  %v82 = vshrl.u32 %v81, 7
  %v83 = vsub.s32 0, %v82
  %v84 = vrot.slane %v79, %v83
  %vm86 = vcmask 64512
  %v88 = vsel %vm86, %v14, 0
  %v91 = vsel %vm86, %v15, 0
  %v94 = vsel %vm86, %v16, 0
  %v97 = vsel %vm86, %v17, 0
  %v100 = vsel %vm86, %v18, 0
  %v103 = vsel %vm86, %v19, 0
  %v106 = vsel %vm86, %v20, 0
  %v109 = vsel %vm86, %v21, 0
  %v112 = vsel %vm86, %v22, 0
  %v115 = vsel %vm86, %v23, 0
  %v118 = vsel %vm86, %v24, 0
  %v121 = vsel %vm86, %v25, 0
  %v124 = vsel %vm86, %v26, 0
  %v127 = vsel %vm86, %v27, 0
  %v130 = vsel %vm86, %v28, 0
  %v133 = vsel %vm86, %v29, 0
  %v136 = vsel %vm86, %v30, 0
  %v139 = vsel %vm86, %v31, 0
  %v142 = vsel %vm86, %v32, 0
  %v145 = vsel %vm86, %v33, 0
  %v148 = vsel %vm86, %v34, 0
  %v151 = vsel %vm86, %v35, 0
  %v154 = vsel %vm86, %v36, 0
  %v157 = vsel %vm86, %v37, 0
  %v160 = vsel %vm86, %v38, 0
  %v163 = vsel %vm86, %v39, 0
  %v166 = vsel %vm86, %v40, 0
  %v169 = vsel %vm86, %v41, 0
  %v172 = vsel %vm86, %v42, 0
  %v175 = vsel %vm86, %v43, 0
  %v178 = vsel %vm86, %v44, 0
  %v181 = vsel %vm86, %v45, 0
  %v184 = vsel %vm86, %v46, 0
  %v187 = vsel %vm86, %v47, 0
  %v190 = vsel %vm86, %v48, 0
  %v193 = vsel %vm86, %v49, 0
  %v196 = vsel %vm86, %v50, 0
  %v199 = vsel %vm86, %v51, 0
  %v202 = vsel %vm86, %v52, 0
  %v205 = vsel %vm86, %v53, 0
  %v208 = vsel %vm86, %v54, 0
  %v211 = vsel %vm86, %v55, 0
  %v214 = vsel %vm86, %v56, 0
  %v217 = vsel %vm86, %v57, 0
  %v220 = vsel %vm86, %v58, 0
  %v223 = vsel %vm86, %v59, 0
  %v226 = vsel %vm86, %v60, 0
  %v229 = vsel %vm86, %v61, 0
  %v232 = vsel %vm86, %v62, 0
  %v235 = vsel %vm86, %v63, 0
  %v238 = vsel %vm86, %v64, 0
  %v241 = vsel %vm86, %v65, 0
  %v244 = vsel %vm86, %v66, 0
  %v247 = vsel %vm86, %v67, 0
  %v250 = vsel %vm86, %v68, 0
  %v253 = vsel %vm86, %v69, 0
  %v256 = vsel %vm86, %v70, 0
  %v259 = vsel %vm86, %v71, 0
  %v262 = vsel %vm86, %v72, 0
  %v265 = vsel %vm86, %v73, 0
  %v268 = vsel %vm86, %v74, 0
  %v271 = vsel %vm86, %v75, 0
  %v274 = vsel %vm86, %v76, 0
  %v277 = vsel %vm86, %v77, 0
  %279 = vmatprep.subr.mxu0 0.0
  %280 = vmatpush1.msra.mxu0 %v78
  %281 = vmatprep.subr.mxu0 0.0
  %282 = vmatpush1.msra.mxu0 0.0
  %283 = vmatprep.subr.mxu0 0.0
  %284 = vmatpush1.msra.mxu0 0.0
  %285 = vmatprep.subr.mxu0 0.0
  %286 = vmatpush1.msra.mxu0 0.0
  %287 = vmatprep.subr.mxu0 0.0
  %288 = vmatpush1.msra.mxu0 0.0
  %289 = vmatprep.subr.mxu0 0.0
  %290 = vmatpush1.msra.mxu0 0.0
  %291 = vmatprep.subr.mxu0 0.0
  %292 = vmatpush1.msra.mxu0 0.0
  %293 = vmatprep.subr.mxu0 0.0
  %294 = vmatpush1.msra.mxu0 0.0
  %295 = vmatprep.subr.mxu0 0.0
  %296 = vmatpush1.msra.mxu0 0.0
  %297 = vmatprep.subr.mxu0 0.0
  %298 = vmatpush1.msra.mxu0 0.0
  %299 = vmatprep.subr.mxu0 0.0
  %300 = vmatpush1.msra.mxu0 0.0
  %301 = vmatprep.subr.mxu0 0.0
  %302 = vmatpush1.msra.mxu0 0.0
  %303 = vmatprep.subr.mxu0 0.0
  %304 = vmatpush1.msra.mxu0 0.0
  %305 = vmatprep.subr.mxu0 0.0
  %306 = vmatpush1.msra.mxu0 0.0
  %307 = vmatprep.subr.mxu0 0.0
  %308 = vmatpush1.msra.mxu0 0.0
  %309 = vmatprep.subr.mxu0 0.0
  %310 = vmatpush1.msra.mxu0 0.0
  %311 = vmatprep.subr.mxu0 0.0
  %312 = vmatpush1.msra.mxu0 0.0
  %313 = vmatprep.subr.mxu0 0.0
  %314 = vmatpush1.msra.mxu0 0.0
  %315 = vmatprep.subr.mxu0 0.0
  %316 = vmatpush1.msra.mxu0 0.0
  %317 = vmatprep.subr.mxu0 0.0
  %318 = vmatpush1.msra.mxu0 0.0
  %319 = vmatprep.subr.mxu0 0.0
  %320 = vmatpush1.msra.mxu0 0.0
  %321 = vmatprep.subr.mxu0 0.0
  %322 = vmatpush1.msra.mxu0 0.0
  %323 = vmatprep.subr.mxu0 0.0
  %324 = vmatpush1.msra.mxu0 0.0
  %325 = vmatprep.subr.mxu0 0.0
  %326 = vmatpush1.msra.mxu0 0.0
  %327 = vmatprep.subr.mxu0 0.0
  %328 = vmatpush1.msra.mxu0 0.0
  %329 = vmatprep.subr.mxu0 0.0
  %330 = vmatpush1.msra.mxu0 0.0
  %331 = vmatprep.subr.mxu0 0.0
  %332 = vmatpush1.msra.mxu0 0.0
  %333 = vmatprep.subr.mxu0 0.0
  %334 = vmatpush1.msra.mxu0 0.0
  %335 = vmatprep.subr.mxu0 0.0
  %336 = vmatpush1.msra.mxu0 0.0
  %337 = vmatprep.subr.mxu0 0.0
  %338 = vmatpush1.msra.mxu0 0.0
  %339 = vmatprep.subr.mxu0 0.0
  %340 = vmatpush1.msra.mxu0 0.0
  %341 = vmatprep.subr.mxu0 0.0
  %342 = vmatpush1.msra.mxu0 0.0
  %343 = vmatprep.mubr.f32.mxu0 0.0
  %344 = vmatmul.mubr.f32.gmra.mrb[0].mxu0 %v88
  %v345 = vpop.f32.mrb[0].mxu0
  %v346 = vadd.f32 %v84, %v345
  %v347 = vpop.f32.mrb[0].mxu0
  %348 = vmatprep.mubr.f32.mxu0 0.0
  %349 = vmatmul.mubr.f32.gmra.mrb[0].mxu0 %v91
  %v350 = vpop.f32.mrb[0].mxu0
  %v351 = vadd.f32 %v84, %v350
  %v352 = vpop.f32.mrb[0].mxu0
  %353 = vmatprep.mubr.f32.mxu0 0.0
  %354 = vmatmul.mubr.f32.gmra.mrb[0].mxu0 %v94
  %v355 = vpop.f32.mrb[0].mxu0
  %v356 = vadd.f32 %v84, %v355
  %v357 = vpop.f32.mrb[0].mxu0
  %358 = vmatprep.mubr.f32.mxu0 0.0
  %359 = vmatmul.mubr.f32.gmra.mrb[0].mxu0 %v97
  %v360 = vpop.f32.mrb[0].mxu0
  %v361 = vadd.f32 %v84, %v360
  %v362 = vpop.f32.mrb[0].mxu0
  %363 = vmatprep.mubr.f32.mxu0 0.0
  %364 = vmatmul.mubr.f32.gmra.mrb[0].mxu0 %v100
  %v365 = vpop.f32.mrb[0].mxu0
  %v366 = vadd.f32 %v84, %v365
  %v367 = vpop.f32.mrb[0].mxu0
  %368 = vmatprep.mubr.f32.mxu0 0.0
  %369 = vmatmul.mubr.f32.gmra.mrb[0].mxu0 %v103
  %v370 = vpop.f32.mrb[0].mxu0
  %v371 = vadd.f32 %v84, %v370
  %v372 = vpop.f32.mrb[0].mxu0
  %373 = vmatprep.mubr.f32.mxu0 0.0
  %374 = vmatmul.mubr.f32.gmra.mrb[0].mxu0 %v106
  %v375 = vpop.f32.mrb[0].mxu0
  %v376 = vadd.f32 %v84, %v375
  %v377 = vpop.f32.mrb[0].mxu0
  %378 = vmatprep.mubr.f32.mxu0 0.0
  %379 = vmatmul.mubr.f32.gmra.mrb[0].mxu0 %v109
  %v380 = vpop.f32.mrb[0].mxu0
  %v381 = vadd.f32 %v84, %v380
  %v382 = vpop.f32.mrb[0].mxu0
  %383 = vmatprep.mubr.f32.mxu0 0.0
  %384 = vmatmul.mubr.f32.gmra.mrb[0].mxu0 %v112
  %v385 = vpop.f32.mrb[0].mxu0
  %v386 = vadd.f32 %v84, %v385
  %v387 = vpop.f32.mrb[0].mxu0
  %388 = vmatprep.mubr.f32.mxu0 0.0
  %389 = vmatmul.mubr.f32.gmra.mrb[0].mxu0 %v115
  %v390 = vpop.f32.mrb[0].mxu0
  %v391 = vadd.f32 %v84, %v390
  %v392 = vpop.f32.mrb[0].mxu0
  %393 = vmatprep.mubr.f32.mxu0 0.0
  %394 = vmatmul.mubr.f32.gmra.mrb[0].mxu0 %v118
  %v395 = vpop.f32.mrb[0].mxu0
  %v396 = vadd.f32 %v84, %v395
  %v397 = vpop.f32.mrb[0].mxu0
  %398 = vmatprep.mubr.f32.mxu0 0.0
  %399 = vmatmul.mubr.f32.gmra.mrb[0].mxu0 %v121
  %v400 = vpop.f32.mrb[0].mxu0
  %v401 = vadd.f32 %v84, %v400
  %v402 = vpop.f32.mrb[0].mxu0
  %403 = vmatprep.mubr.f32.mxu0 0.0
  %404 = vmatmul.mubr.f32.gmra.mrb[0].mxu0 %v124
  %v405 = vpop.f32.mrb[0].mxu0
  %v406 = vadd.f32 %v84, %v405
  %v407 = vpop.f32.mrb[0].mxu0
  %408 = vmatprep.mubr.f32.mxu0 0.0
  %409 = vmatmul.mubr.f32.gmra.mrb[0].mxu0 %v127
  %v410 = vpop.f32.mrb[0].mxu0
  %v411 = vadd.f32 %v84, %v410
  %v412 = vpop.f32.mrb[0].mxu0
  %413 = vmatprep.mubr.f32.mxu0 0.0
  %414 = vmatmul.mubr.f32.gmra.mrb[0].mxu0 %v130
  %v415 = vpop.f32.mrb[0].mxu0
  %v416 = vadd.f32 %v84, %v415
  %v417 = vpop.f32.mrb[0].mxu0
  %418 = vmatprep.mubr.f32.mxu0 0.0
  %419 = vmatmul.mubr.f32.gmra.mrb[0].mxu0 %v133
  %v420 = vpop.f32.mrb[0].mxu0
  %v421 = vadd.f32 %v84, %v420
  %v422 = vpop.f32.mrb[0].mxu0
  %423 = vmatprep.mubr.f32.mxu0 0.0
  %424 = vmatmul.mubr.f32.gmra.mrb[0].mxu0 %v136
  %v425 = vpop.f32.mrb[0].mxu0
  %v426 = vadd.f32 %v84, %v425
  %v427 = vpop.f32.mrb[0].mxu0
  %428 = vmatprep.mubr.f32.mxu0 0.0
  %429 = vmatmul.mubr.f32.gmra.mrb[0].mxu0 %v139
  %v430 = vpop.f32.mrb[0].mxu0
  %v431 = vadd.f32 %v84, %v430
  %v432 = vpop.f32.mrb[0].mxu0
  %433 = vmatprep.mubr.f32.mxu0 0.0
  %434 = vmatmul.mubr.f32.gmra.mrb[0].mxu0 %v142
  %v435 = vpop.f32.mrb[0].mxu0
  %v436 = vadd.f32 %v84, %v435
  %v437 = vpop.f32.mrb[0].mxu0
  %438 = vmatprep.mubr.f32.mxu0 0.0
  %439 = vmatmul.mubr.f32.gmra.mrb[0].mxu0 %v145
  %v440 = vpop.f32.mrb[0].mxu0
  %v441 = vadd.f32 %v84, %v440
  %v442 = vpop.f32.mrb[0].mxu0
  %443 = vmatprep.mubr.f32.mxu0 0.0
  %444 = vmatmul.mubr.f32.gmra.mrb[0].mxu0 %v148
  %v445 = vpop.f32.mrb[0].mxu0
  %v446 = vadd.f32 %v84, %v445
  %v447 = vpop.f32.mrb[0].mxu0
  %448 = vmatprep.mubr.f32.mxu0 0.0
  %449 = vmatmul.mubr.f32.gmra.mrb[0].mxu0 %v151
  %v450 = vpop.f32.mrb[0].mxu0
  %v451 = vadd.f32 %v84, %v450
  %v452 = vpop.f32.mrb[0].mxu0
  %453 = vmatprep.mubr.f32.mxu0 0.0
  %454 = vmatmul.mubr.f32.gmra.mrb[0].mxu0 %v154
  %v455 = vpop.f32.mrb[0].mxu0
  %v456 = vadd.f32 %v84, %v455
  %v457 = vpop.f32.mrb[0].mxu0
  %458 = vmatprep.mubr.f32.mxu0 0.0
  %459 = vmatmul.mubr.f32.gmra.mrb[0].mxu0 %v157
  %v460 = vpop.f32.mrb[0].mxu0
  %v461 = vadd.f32 %v84, %v460
  %v462 = vpop.f32.mrb[0].mxu0
  %463 = vmatprep.mubr.f32.mxu0 0.0
  %464 = vmatmul.mubr.f32.gmra.mrb[0].mxu0 %v160
  %v465 = vpop.f32.mrb[0].mxu0
  %v466 = vadd.f32 %v84, %v465
  %v467 = vpop.f32.mrb[0].mxu0
  %468 = vmatprep.mubr.f32.mxu0 0.0
  %469 = vmatmul.mubr.f32.gmra.mrb[0].mxu0 %v163
  %v470 = vpop.f32.mrb[0].mxu0
  %v471 = vadd.f32 %v84, %v470
  %v472 = vpop.f32.mrb[0].mxu0
  %473 = vmatprep.mubr.f32.mxu0 0.0
  %474 = vmatmul.mubr.f32.gmra.mrb[0].mxu0 %v166
  %v475 = vpop.f32.mrb[0].mxu0
  %v476 = vadd.f32 %v84, %v475
  %v477 = vpop.f32.mrb[0].mxu0
  %478 = vmatprep.mubr.f32.mxu0 0.0
  %479 = vmatmul.mubr.f32.gmra.mrb[0].mxu0 %v169
  %v480 = vpop.f32.mrb[0].mxu0
  %v481 = vadd.f32 %v84, %v480
  %v482 = vpop.f32.mrb[0].mxu0
  %483 = vmatprep.mubr.f32.mxu0 0.0
  %484 = vmatmul.mubr.f32.gmra.mrb[0].mxu0 %v172
  %v485 = vpop.f32.mrb[0].mxu0
  %v486 = vadd.f32 %v84, %v485
  %v487 = vpop.f32.mrb[0].mxu0
  %488 = vmatprep.mubr.f32.mxu0 0.0
  %489 = vmatmul.mubr.f32.gmra.mrb[0].mxu0 %v175
  %v490 = vpop.f32.mrb[0].mxu0
  %v491 = vadd.f32 %v84, %v490
  %v492 = vpop.f32.mrb[0].mxu0
  %493 = vmatprep.mubr.f32.mxu0 0.0
  %494 = vmatmul.mubr.f32.gmra.mrb[0].mxu0 %v178
  %v495 = vpop.f32.mrb[0].mxu0
  %v496 = vadd.f32 %v84, %v495
  %v497 = vpop.f32.mrb[0].mxu0
  %498 = vmatprep.mubr.f32.mxu0 0.0
  %499 = vmatmul.mubr.f32.gmra.mrb[0].mxu0 %v181
  %v500 = vpop.f32.mrb[0].mxu0
  %v501 = vadd.f32 %v84, %v500
  %v502 = vpop.f32.mrb[0].mxu0
  %503 = vmatprep.mubr.f32.mxu0 0.0
  %504 = vmatmul.mubr.f32.gmra.mrb[0].mxu0 %v184
  %v505 = vpop.f32.mrb[0].mxu0
  %v506 = vadd.f32 %v84, %v505
  %v507 = vpop.f32.mrb[0].mxu0
  %508 = vmatprep.mubr.f32.mxu0 0.0
  %509 = vmatmul.mubr.f32.gmra.mrb[0].mxu0 %v187
  %v510 = vpop.f32.mrb[0].mxu0
  %v511 = vadd.f32 %v84, %v510
  %v512 = vpop.f32.mrb[0].mxu0
  %513 = vmatprep.mubr.f32.mxu0 0.0
  %514 = vmatmul.mubr.f32.gmra.mrb[0].mxu0 %v190
  %v515 = vpop.f32.mrb[0].mxu0
  %v516 = vadd.f32 %v84, %v515
  %v517 = vpop.f32.mrb[0].mxu0
  %518 = vmatprep.mubr.f32.mxu0 0.0
  %519 = vmatmul.mubr.f32.gmra.mrb[0].mxu0 %v193
  %v520 = vpop.f32.mrb[0].mxu0
  %v521 = vadd.f32 %v84, %v520
  %v522 = vpop.f32.mrb[0].mxu0
  %523 = vmatprep.mubr.f32.mxu0 0.0
  %524 = vmatmul.mubr.f32.gmra.mrb[0].mxu0 %v196
  %v525 = vpop.f32.mrb[0].mxu0
  %v526 = vadd.f32 %v84, %v525
  %v527 = vpop.f32.mrb[0].mxu0
  %528 = vmatprep.mubr.f32.mxu0 0.0
  %529 = vmatmul.mubr.f32.gmra.mrb[0].mxu0 %v199
  %v530 = vpop.f32.mrb[0].mxu0
  %v531 = vadd.f32 %v84, %v530
  %v532 = vpop.f32.mrb[0].mxu0
  %533 = vmatprep.mubr.f32.mxu0 0.0
  %534 = vmatmul.mubr.f32.gmra.mrb[0].mxu0 %v202
  %v535 = vpop.f32.mrb[0].mxu0
  %v536 = vadd.f32 %v84, %v535
  %v537 = vpop.f32.mrb[0].mxu0
  %538 = vmatprep.mubr.f32.mxu0 0.0
  %539 = vmatmul.mubr.f32.gmra.mrb[0].mxu0 %v205
  %v540 = vpop.f32.mrb[0].mxu0
  %v541 = vadd.f32 %v84, %v540
  %v542 = vpop.f32.mrb[0].mxu0
  %543 = vmatprep.mubr.f32.mxu0 0.0
  %544 = vmatmul.mubr.f32.gmra.mrb[0].mxu0 %v208
  %v545 = vpop.f32.mrb[0].mxu0
  %v546 = vadd.f32 %v84, %v545
  %v547 = vpop.f32.mrb[0].mxu0
  %548 = vmatprep.mubr.f32.mxu0 0.0
  %549 = vmatmul.mubr.f32.gmra.mrb[0].mxu0 %v211
  %v550 = vpop.f32.mrb[0].mxu0
  %v551 = vadd.f32 %v84, %v550
  %v552 = vpop.f32.mrb[0].mxu0
  %553 = vmatprep.mubr.f32.mxu0 0.0
  %554 = vmatmul.mubr.f32.gmra.mrb[0].mxu0 %v214
  %v555 = vpop.f32.mrb[0].mxu0
  %v556 = vadd.f32 %v84, %v555
  %v557 = vpop.f32.mrb[0].mxu0
  %558 = vmatprep.mubr.f32.mxu0 0.0
  %559 = vmatmul.mubr.f32.gmra.mrb[0].mxu0 %v217
  %v560 = vpop.f32.mrb[0].mxu0
  %v561 = vadd.f32 %v84, %v560
  %v562 = vpop.f32.mrb[0].mxu0
  %563 = vmatprep.mubr.f32.mxu0 0.0
  %564 = vmatmul.mubr.f32.gmra.mrb[0].mxu0 %v220
  %v565 = vpop.f32.mrb[0].mxu0
  %v566 = vadd.f32 %v84, %v565
  %v567 = vpop.f32.mrb[0].mxu0
  %568 = vmatprep.mubr.f32.mxu0 0.0
  %569 = vmatmul.mubr.f32.gmra.mrb[0].mxu0 %v223
  %v570 = vpop.f32.mrb[0].mxu0
  %v571 = vadd.f32 %v84, %v570
  %v572 = vpop.f32.mrb[0].mxu0
  %573 = vmatprep.mubr.f32.mxu0 0.0
  %574 = vmatmul.mubr.f32.gmra.mrb[0].mxu0 %v226
  %v575 = vpop.f32.mrb[0].mxu0
  %v576 = vadd.f32 %v84, %v575
  %v577 = vpop.f32.mrb[0].mxu0
  %578 = vmatprep.mubr.f32.mxu0 0.0
  %579 = vmatmul.mubr.f32.gmra.mrb[0].mxu0 %v229
  %v580 = vpop.f32.mrb[0].mxu0
  %v581 = vadd.f32 %v84, %v580
  %v582 = vpop.f32.mrb[0].mxu0
  %583 = vmatprep.mubr.f32.mxu0 0.0
  %584 = vmatmul.mubr.f32.gmra.mrb[0].mxu0 %v232
  %v585 = vpop.f32.mrb[0].mxu0
  %v586 = vadd.f32 %v84, %v585
  %v587 = vpop.f32.mrb[0].mxu0
  %588 = vmatprep.mubr.f32.mxu0 0.0
  %589 = vmatmul.mubr.f32.gmra.mrb[0].mxu0 %v235
  %v590 = vpop.f32.mrb[0].mxu0
  %v591 = vadd.f32 %v84, %v590
  %v592 = vpop.f32.mrb[0].mxu0
  %593 = vmatprep.mubr.f32.mxu0 0.0
  %594 = vmatmul.mubr.f32.gmra.mrb[0].mxu0 %v238
  %v595 = vpop.f32.mrb[0].mxu0
  %v596 = vadd.f32 %v84, %v595
  %v597 = vpop.f32.mrb[0].mxu0
  %598 = vmatprep.mubr.f32.mxu0 0.0
  %599 = vmatmul.mubr.f32.gmra.mrb[0].mxu0 %v241
  %v600 = vpop.f32.mrb[0].mxu0
  %v601 = vadd.f32 %v84, %v600
  %v602 = vpop.f32.mrb[0].mxu0
  %603 = vmatprep.mubr.f32.mxu0 0.0
  %604 = vmatmul.mubr.f32.gmra.mrb[0].mxu0 %v244
  %v605 = vpop.f32.mrb[0].mxu0
  %v606 = vadd.f32 %v84, %v605
  %v607 = vpop.f32.mrb[0].mxu0
  %608 = vmatprep.mubr.f32.mxu0 0.0
  %609 = vmatmul.mubr.f32.gmra.mrb[0].mxu0 %v247
  %v610 = vpop.f32.mrb[0].mxu0
  %v611 = vadd.f32 %v84, %v610
  %v612 = vpop.f32.mrb[0].mxu0
  %613 = vmatprep.mubr.f32.mxu0 0.0
  %614 = vmatmul.mubr.f32.gmra.mrb[0].mxu0 %v250
  %v615 = vpop.f32.mrb[0].mxu0
  %v616 = vadd.f32 %v84, %v615
  %v617 = vpop.f32.mrb[0].mxu0
  %618 = vmatprep.mubr.f32.mxu0 0.0
  %619 = vmatmul.mubr.f32.gmra.mrb[0].mxu0 %v253
  %v620 = vpop.f32.mrb[0].mxu0
  %v621 = vadd.f32 %v84, %v620
  %v622 = vpop.f32.mrb[0].mxu0
  %623 = vmatprep.mubr.f32.mxu0 0.0
  %624 = vmatmul.mubr.f32.gmra.mrb[0].mxu0 %v256
  %v625 = vpop.f32.mrb[0].mxu0
  %v626 = vadd.f32 %v84, %v625
  %v627 = vpop.f32.mrb[0].mxu0
  %628 = vmatprep.mubr.f32.mxu0 0.0
  %629 = vmatmul.mubr.f32.gmra.mrb[0].mxu0 %v259
  %v630 = vpop.f32.mrb[0].mxu0
  %v631 = vadd.f32 %v84, %v630
  %v632 = vpop.f32.mrb[0].mxu0
  %633 = vmatprep.mubr.f32.mxu0 0.0
  %634 = vmatmul.mubr.f32.gmra.mrb[0].mxu0 %v262
  %v635 = vpop.f32.mrb[0].mxu0
  %v636 = vadd.f32 %v84, %v635
  %v637 = vpop.f32.mrb[0].mxu0
  %638 = vmatprep.mubr.f32.mxu0 0.0
  %639 = vmatmul.mubr.f32.gmra.mrb[0].mxu0 %v265
  %v640 = vpop.f32.mrb[0].mxu0
  %v641 = vadd.f32 %v84, %v640
  %v642 = vpop.f32.mrb[0].mxu0
  %643 = vmatprep.mubr.f32.mxu0 0.0
  %644 = vmatmul.mubr.f32.gmra.mrb[0].mxu0 %v268
  %v645 = vpop.f32.mrb[0].mxu0
  %v646 = vadd.f32 %v84, %v645
  %v647 = vpop.f32.mrb[0].mxu0
  %648 = vmatprep.mubr.f32.mxu0 0.0
  %649 = vmatmul.mubr.f32.gmra.mrb[0].mxu0 %v271
  %v650 = vpop.f32.mrb[0].mxu0
  %v651 = vadd.f32 %v84, %v650
  %v652 = vpop.f32.mrb[0].mxu0
  %653 = vmatprep.mubr.f32.mxu0 0.0
  %654 = vmatmul.mubr.f32.gmra.mrb[0].mxu0 %v274
  %v655 = vpop.f32.mrb[0].mxu0
  %v656 = vadd.f32 %v84, %v655
  %v657 = vpop.f32.mrb[0].mxu0
  %658 = vmatprep.mubr.f32.mxu0 0.0
  %659 = vmatmul.mubr.f32.gmra.mrb[0].mxu0 %v277
  %v660 = vpop.f32.mrb[0].mxu0
  %v661 = vadd.f32 %v84, %v660
  %v662 = vpop.f32.mrb[0].mxu0
  %663 = vdwg.mxu0
  %v664 = vmax.f32 %v346, 0.0
  %v665 = vmax.f32 %v351, 0.0
  %v666 = vmax.f32 %v356, 0.0
  %v667 = vmax.f32 %v361, 0.0
  %v668 = vmax.f32 %v366, 0.0
  %v669 = vmax.f32 %v371, 0.0
  %v670 = vmax.f32 %v376, 0.0
  %v671 = vmax.f32 %v381, 0.0
  %v672 = vmax.f32 %v386, 0.0
  %v673 = vmax.f32 %v391, 0.0
  %v674 = vmax.f32 %v396, 0.0
  %v675 = vmax.f32 %v401, 0.0
  %v676 = vmax.f32 %v406, 0.0
  %v677 = vmax.f32 %v411, 0.0
  %v678 = vmax.f32 %v416, 0.0
  %v679 = vmax.f32 %v421, 0.0
  %v680 = vmax.f32 %v426, 0.0
  %v681 = vmax.f32 %v431, 0.0
  %v682 = vmax.f32 %v436, 0.0
  %v683 = vmax.f32 %v441, 0.0
  %v684 = vmax.f32 %v446, 0.0
  %v685 = vmax.f32 %v451, 0.0
  %v686 = vmax.f32 %v456, 0.0
  %v687 = vmax.f32 %v461, 0.0
  %v688 = vmax.f32 %v466, 0.0
  %v689 = vmax.f32 %v471, 0.0
  %v690 = vmax.f32 %v476, 0.0
  %v691 = vmax.f32 %v481, 0.0
  %v692 = vmax.f32 %v486, 0.0
  %v693 = vmax.f32 %v491, 0.0
  %v694 = vmax.f32 %v496, 0.0
  %v695 = vmax.f32 %v501, 0.0
  %v696 = vmax.f32 %v506, 0.0
  %v697 = vmax.f32 %v511, 0.0
  %v698 = vmax.f32 %v516, 0.0
  %v699 = vmax.f32 %v521, 0.0
  %v700 = vmax.f32 %v526, 0.0
  %v701 = vmax.f32 %v531, 0.0
  %v702 = vmax.f32 %v536, 0.0
  %v703 = vmax.f32 %v541, 0.0
  %v704 = vmax.f32 %v546, 0.0
  %v705 = vmax.f32 %v551, 0.0
  %v706 = vmax.f32 %v556, 0.0
  %v707 = vmax.f32 %v561, 0.0
  %v708 = vmax.f32 %v566, 0.0
  %v709 = vmax.f32 %v571, 0.0
  %v710 = vmax.f32 %v576, 0.0
  %v711 = vmax.f32 %v581, 0.0
  %v712 = vmax.f32 %v586, 0.0
  %v713 = vmax.f32 %v591, 0.0
  %v714 = vmax.f32 %v596, 0.0
  %v715 = vmax.f32 %v601, 0.0
  %v716 = vmax.f32 %v606, 0.0
  %v717 = vmax.f32 %v611, 0.0
  %v718 = vmax.f32 %v616, 0.0
  %v719 = vmax.f32 %v621, 0.0
  %v720 = vmax.f32 %v626, 0.0
  %v721 = vmax.f32 %v631, 0.0
  %v722 = vmax.f32 %v636, 0.0
  %v723 = vmax.f32 %v641, 0.0
  %v724 = vmax.f32 %v646, 0.0
  %v725 = vmax.f32 %v651, 0.0
  %v726 = vmax.f32 %v656, 0.0
  %v727 = vmax.f32 %v661, 0.0
  %728 = vst [vmem:[%s3] sm:$0xff] %v664
  %729 = vst [vmem:[%s3 + $0x8] sm:$0xff] %v665
  %730 = vst [vmem:[%s3 + $0x10] sm:$0xff] %v666
  %731 = vst [vmem:[%s3 + $0x18] sm:$0xff] %v667
  %732 = vst [vmem:[%s3 + $0x20] sm:$0xff] %v668
  %733 = vst [vmem:[%s3 + $0x28] sm:$0xff] %v669
  %734 = vst [vmem:[%s3 + $0x30] sm:$0xff] %v670
  %735 = vst [vmem:[%s3 + $0x38] sm:$0xff] %v671
  %736 = vst [vmem:[%s3 + $0x40] sm:$0xff] %v672
  %737 = vst [vmem:[%s3 + $0x48] sm:$0xff] %v673
  %738 = vst [vmem:[%s3 + $0x50] sm:$0xff] %v674
  %739 = vst [vmem:[%s3 + $0x58] sm:$0xff] %v675
  %740 = vst [vmem:[%s3 + $0x60] sm:$0xff] %v676
  %741 = vst [vmem:[%s3 + $0x68] sm:$0xff] %v677
  %742 = vst [vmem:[%s3 + $0x70] sm:$0xff] %v678
  %743 = vst [vmem:[%s3 + $0x78] sm:$0xff] %v679
  %744 = vst [vmem:[%s3 + $0x80] sm:$0xff] %v680
  %745 = vst [vmem:[%s3 + $0x88] sm:$0xff] %v681
  %746 = vst [vmem:[%s3 + $0x90] sm:$0xff] %v682
  %747 = vst [vmem:[%s3 + $0x98] sm:$0xff] %v683
  %748 = vst [vmem:[%s3 + $0xa0] sm:$0xff] %v684
  %749 = vst [vmem:[%s3 + $0xa8] sm:$0xff] %v685
  %750 = vst [vmem:[%s3 + $0xb0] sm:$0xff] %v686
  %751 = vst [vmem:[%s3 + $0xb8] sm:$0xff] %v687
  %752 = vst [vmem:[%s3 + $0xc0] sm:$0xff] %v688
  %753 = vst [vmem:[%s3 + $0xc8] sm:$0xff] %v689
  %754 = vst [vmem:[%s3 + $0xd0] sm:$0xff] %v690
  %755 = vst [vmem:[%s3 + $0xd8] sm:$0xff] %v691
  %756 = vst [vmem:[%s3 + $0xe0] sm:$0xff] %v692
  %757 = vst [vmem:[%s3 + $0xe8] sm:$0xff] %v693
  %758 = vst [vmem:[%s3 + $0xf0] sm:$0xff] %v694
  %759 = vst [vmem:[%s3 + $0xf8] sm:$0xff] %v695
  %760 = vst [vmem:[%s3 + $0x100] sm:$0xff] %v696
  %761 = vst [vmem:[%s3 + $0x108] sm:$0xff] %v697
  %762 = vst [vmem:[%s3 + $0x110] sm:$0xff] %v698
  %763 = vst [vmem:[%s3 + $0x118] sm:$0xff] %v699
  %764 = vst [vmem:[%s3 + $0x120] sm:$0xff] %v700
  %765 = vst [vmem:[%s3 + $0x128] sm:$0xff] %v701
  %766 = vst [vmem:[%s3 + $0x130] sm:$0xff] %v702
  %767 = vst [vmem:[%s3 + $0x138] sm:$0xff] %v703
  %768 = vst [vmem:[%s3 + $0x140] sm:$0xff] %v704
  %769 = vst [vmem:[%s3 + $0x148] sm:$0xff] %v705
  %770 = vst [vmem:[%s3 + $0x150] sm:$0xff] %v706
  %771 = vst [vmem:[%s3 + $0x158] sm:$0xff] %v707
  %772 = vst [vmem:[%s3 + $0x160] sm:$0xff] %v708
  %773 = vst [vmem:[%s3 + $0x168] sm:$0xff] %v709
  %774 = vst [vmem:[%s3 + $0x170] sm:$0xff] %v710
  %775 = vst [vmem:[%s3 + $0x178] sm:$0xff] %v711
  %776 = vst [vmem:[%s3 + $0x180] sm:$0xff] %v712
  %777 = vst [vmem:[%s3 + $0x188] sm:$0xff] %v713
  %778 = vst [vmem:[%s3 + $0x190] sm:$0xff] %v714
  %779 = vst [vmem:[%s3 + $0x198] sm:$0xff] %v715
  %780 = vst [vmem:[%s3 + $0x1a0] sm:$0xff] %v716
  %781 = vst [vmem:[%s3 + $0x1a8] sm:$0xff] %v717
  %782 = vst [vmem:[%s3 + $0x1b0] sm:$0xff] %v718
  %783 = vst [vmem:[%s3 + $0x1b8] sm:$0xff] %v719
  %784 = vst [vmem:[%s3 + $0x1c0] sm:$0xff] %v720
  %785 = vst [vmem:[%s3 + $0x1c8] sm:$0xff] %v721
  %786 = vst [vmem:[%s3 + $0x1d0] sm:$0xff] %v722
  %787 = vst [vmem:[%s3 + $0x1d8] sm:$0xff] %v723
  %788 = vst [vmem:[%s3 + $0x1e0] sm:$0xff] %v724
  %789 = vst [vmem:[%s3 + $0x1e8] sm:$0xff] %v725
  %790 = vst [vmem:[%s3 + $0x1f0] sm:$0xff] %v726
  %791 = vst [vmem:[%s3 + $0x1f8] sm:$0xff] %v727
  // Predicated region
  $region14: #{inception_v3_module_d.8} parent=0 // pred_check
    _
  $region15: #{inception_v3_module_d.8} parent=0 // pred_check_branch
    %793 = sbr.rel (0) target = $region17
  $region16: #{inception_v3_module_d.8} parent=0 // pred_region
    _
  $region17: #{inception_v3_module_d.8} parent=0 // pred_fallthru
    _
  // Predicated region
  $region18: #{inception_v3_module_d.8} parent=0 // pred_check
    _
  $region19: #{inception_v3_module_d.8} parent=0 // pred_check_branch
    %795 = sbr.rel (0) target = $region21
  $region20: #{inception_v3_module_d.8} parent=0 // pred_region
    _
  $region21: #{inception_v3_module_d.8} parent=0 // pred_fallthru
    _

// kernel: inception_v3_module_d.7
$region0: #{inception_v3_module_d.7}
  #allocation0 [shape = 'u32[]', space=smem, size = 0x4, offset = 0x4, fixed_abs, tag = 'smem constant byte address 0x4 - core index']
  #allocation1 [shape = 'u32[144,128]{1,0:T(1,128)}', space=vmem, size = 0x12000, scoped, tag = 'internal scratch']
  %s0 = inlined_call_operand.vmem [shape: f32[128,72], index: 0, kind: input, shape index: {}]
  %s1 = inlined_call_operand.vmem [shape: f32[72,128], index: 1, kind: input, shape index: {}]
  %s2 = inlined_call_operand.vmem [shape: f32[1,128], index: 2, kind: input, shape index: {}]
  %s3 = inlined_call_operand.vmem [shape: f32[128,128], index: 3, kind: output, shape index: {}]
  %s4 = sld [smem:[#allocation0]]
  $region22: #{inception_v3_module_d.7} parent=0
    _
  %s6 = ssub.s32 1, %s4
  %s7 = scalar_select 0, %s6, %s4
  // Predicated region
  $region2: #{inception_v3_module_d.7} parent=0 // pred_check
    _
  $region3: #{inception_v3_module_d.7} parent=0 // pred_check_branch
    %9 = sbr.rel (0) target = $region5
  $region4: #{inception_v3_module_d.7} parent=0 // pred_region
    _
  $region5: #{inception_v3_module_d.7} parent=0 // pred_fallthru
    _
  // Predicated region
  $region6: #{inception_v3_module_d.7} parent=0 // pred_check
    _
  $region7: #{inception_v3_module_d.7} parent=0 // pred_check_branch
    %11 = sbr.rel (0) target = $region9
  $region8: #{inception_v3_module_d.7} parent=0 // pred_region
    _
  $region9: #{inception_v3_module_d.7} parent=0 // pred_fallthru
    _
  // Predicated region
  $region10: #{inception_v3_module_d.7} parent=0 // pred_check
    _
  $region11: #{inception_v3_module_d.7} parent=0 // pred_check_branch
    %13 = sbr.rel (0) target = $region13
  $region12: #{inception_v3_module_d.7} parent=0 // pred_region
    _
  $region13: #{inception_v3_module_d.7} parent=0 // pred_fallthru
    _
  %v14 = vld [vmem:[%s0] sm:$0xff]
  %v15 = vld [vmem:[%s0 + $0x8] sm:$0xff]
  %v16 = vld [vmem:[%s0 + $0x10] sm:$0xff]
  %v17 = vld [vmem:[%s0 + $0x18] sm:$0xff]
  %v18 = vld [vmem:[%s0 + $0x20] sm:$0xff]
  %v19 = vld [vmem:[%s0 + $0x28] sm:$0xff]
  %v20 = vld [vmem:[%s0 + $0x30] sm:$0xff]
  %v21 = vld [vmem:[%s0 + $0x38] sm:$0xff]
  %v22 = vld [vmem:[%s0 + $0x40] sm:$0xff]
  %v23 = vld [vmem:[%s0 + $0x48] sm:$0xff]
  %v24 = vld [vmem:[%s0 + $0x50] sm:$0xff]
  %v25 = vld [vmem:[%s0 + $0x58] sm:$0xff]
  %v26 = vld [vmem:[%s0 + $0x60] sm:$0xff]
  %v27 = vld [vmem:[%s0 + $0x68] sm:$0xff]
  %v28 = vld [vmem:[%s0 + $0x70] sm:$0xff]
  %v29 = vld [vmem:[%s0 + $0x78] sm:$0xff]
  %v30 = vld [vmem:[%s1] sm:$0xff]
  %v31 = vld [vmem:[%s1 + $0x8] sm:$0xff]
  %v32 = vld [vmem:[%s1 + $0x10] sm:$0xff]
  %v33 = vld [vmem:[%s1 + $0x18] sm:$0xff]
  %v34 = vld [vmem:[%s1 + $0x20] sm:$0xff]
  %v35 = vld [vmem:[%s1 + $0x28] sm:$0xff]
  %v36 = vld [vmem:[%s1 + $0x30] sm:$0xff]
  %v37 = vld [vmem:[%s1 + $0x38] sm:$0xff]
  %v38 = vld [vmem:[%s1 + $0x40] sm:$0xff]
  %v39 = vld [vmem:[%s2] sm:$0x1]
  %v41 = vlaneseq
  %v42 = vshrl.u32 %v41, 7
  %v43 = vsub.s32 0, %v42
  %v44 = vrot.slane %v39, %v43
  %vm46 = vcmask 588800
  %v48 = vsel %vm46, %v14, 0
  %v51 = vsel %vm46, %v15, 0
  %v54 = vsel %vm46, %v16, 0
  %v57 = vsel %vm46, %v17, 0
  %v60 = vsel %vm46, %v18, 0
  %v63 = vsel %vm46, %v19, 0
  %v66 = vsel %vm46, %v20, 0
  %v69 = vsel %vm46, %v21, 0
  %v72 = vsel %vm46, %v22, 0
  %v75 = vsel %vm46, %v23, 0
  %v78 = vsel %vm46, %v24, 0
  %v81 = vsel %vm46, %v25, 0
  %v84 = vsel %vm46, %v26, 0
  %v87 = vsel %vm46, %v27, 0
  %v90 = vsel %vm46, %v28, 0
  %v93 = vsel %vm46, %v29, 0
  %95 = vmatprep.subr.mxu0 0.0
  %96 = vmatpush1.msra.mxu0 %v30
  %97 = vmatprep.subr.mxu0 0.0
  %98 = vmatpush1.msra.mxu0 %v31
  %99 = vmatprep.subr.mxu0 0.0
  %100 = vmatpush1.msra.mxu0 %v32
  %101 = vmatprep.subr.mxu0 0.0
  %102 = vmatpush1.msra.mxu0 %v33
  %103 = vmatprep.subr.mxu0 0.0
  %104 = vmatpush1.msra.mxu0 %v34
  %105 = vmatprep.subr.mxu0 0.0
  %106 = vmatpush1.msra.mxu0 %v35
  %107 = vmatprep.subr.mxu0 0.0
  %108 = vmatpush1.msra.mxu0 %v36
  %109 = vmatprep.subr.mxu0 0.0
  %110 = vmatpush1.msra.mxu0 %v37
  %111 = vmatprep.subr.mxu0 0.0
  %112 = vmatpush1.msra.mxu0 %v38
  %113 = vmatprep.subr.mxu0 0.0
  %114 = vmatpush1.msra.mxu0 0.0
  %115 = vmatprep.subr.mxu0 0.0
  %116 = vmatpush1.msra.mxu0 0.0
  %117 = vmatprep.subr.mxu0 0.0
  %118 = vmatpush1.msra.mxu0 0.0
  %119 = vmatprep.subr.mxu0 0.0
  %120 = vmatpush1.msra.mxu0 0.0
  %121 = vmatprep.subr.mxu0 0.0
  %122 = vmatpush1.msra.mxu0 0.0
  %123 = vmatprep.subr.mxu0 0.0
  %124 = vmatpush1.msra.mxu0 0.0
  %125 = vmatprep.subr.mxu0 0.0
  %126 = vmatpush1.msra.mxu0 0.0
  %127 = vmatprep.subr.mxu0 0.0
  %128 = vmatpush1.msra.mxu0 0.0
  %129 = vmatprep.subr.mxu0 0.0
  %130 = vmatpush1.msra.mxu0 0.0
  %131 = vmatprep.subr.mxu0 0.0
  %132 = vmatpush1.msra.mxu0 0.0
  %133 = vmatprep.subr.mxu0 0.0
  %134 = vmatpush1.msra.mxu0 0.0
  %135 = vmatprep.subr.mxu0 0.0
  %136 = vmatpush1.msra.mxu0 0.0
  %137 = vmatprep.subr.mxu0 0.0
  %138 = vmatpush1.msra.mxu0 0.0
  %139 = vmatprep.subr.mxu0 0.0
  %140 = vmatpush1.msra.mxu0 0.0
  %141 = vmatprep.subr.mxu0 0.0
  %142 = vmatpush1.msra.mxu0 0.0
  %143 = vmatprep.subr.mxu0 0.0
  %144 = vmatpush1.msra.mxu0 0.0
  %145 = vmatprep.subr.mxu0 0.0
  %146 = vmatpush1.msra.mxu0 0.0
  %147 = vmatprep.subr.mxu0 0.0
  %148 = vmatpush1.msra.mxu0 0.0
  %149 = vmatprep.subr.mxu0 0.0
  %150 = vmatpush1.msra.mxu0 0.0
  %151 = vmatprep.subr.mxu0 0.0
  %152 = vmatpush1.msra.mxu0 0.0
  %153 = vmatprep.subr.mxu0 0.0
  %154 = vmatpush1.msra.mxu0 0.0
  %155 = vmatprep.subr.mxu0 0.0
  %156 = vmatpush1.msra.mxu0 0.0
  %157 = vmatprep.subr.mxu0 0.0
  %158 = vmatpush1.msra.mxu0 0.0
  %159 = vmatprep.mubr.f32.mxu0 0.0
  %160 = vmatmul.mubr.f32.gmra.mrb[0].mxu0 %v48
  %v161 = vpop.f32.mrb[0].mxu0
  %v162 = vadd.f32 %v44, %v161
  %v163 = vpop.f32.mrb[0].mxu0
  %164 = vmatprep.mubr.f32.mxu0 0.0
  %165 = vmatmul.mubr.f32.gmra.mrb[0].mxu0 %v51
  %v166 = vpop.f32.mrb[0].mxu0
  %v167 = vadd.f32 %v44, %v166
  %v168 = vpop.f32.mrb[0].mxu0
  %169 = vmatprep.mubr.f32.mxu0 0.0
  %170 = vmatmul.mubr.f32.gmra.mrb[0].mxu0 %v54
  %v171 = vpop.f32.mrb[0].mxu0
  %v172 = vadd.f32 %v44, %v171
  %v173 = vpop.f32.mrb[0].mxu0
  %174 = vmatprep.mubr.f32.mxu0 0.0
  %175 = vmatmul.mubr.f32.gmra.mrb[0].mxu0 %v57
  %v176 = vpop.f32.mrb[0].mxu0
  %v177 = vadd.f32 %v44, %v176
  %v178 = vpop.f32.mrb[0].mxu0
  %179 = vmatprep.mubr.f32.mxu0 0.0
  %180 = vmatmul.mubr.f32.gmra.mrb[0].mxu0 %v60
  %v181 = vpop.f32.mrb[0].mxu0
  %v182 = vadd.f32 %v44, %v181
  %v183 = vpop.f32.mrb[0].mxu0
  %184 = vmatprep.mubr.f32.mxu0 0.0
  %185 = vmatmul.mubr.f32.gmra.mrb[0].mxu0 %v63
  %v186 = vpop.f32.mrb[0].mxu0
  %v187 = vadd.f32 %v44, %v186
  %v188 = vpop.f32.mrb[0].mxu0
  %189 = vmatprep.mubr.f32.mxu0 0.0
  %190 = vmatmul.mubr.f32.gmra.mrb[0].mxu0 %v66
  %v191 = vpop.f32.mrb[0].mxu0
  %v192 = vadd.f32 %v44, %v191
  %v193 = vpop.f32.mrb[0].mxu0
  %194 = vmatprep.mubr.f32.mxu0 0.0
  %195 = vmatmul.mubr.f32.gmra.mrb[0].mxu0 %v69
  %v196 = vpop.f32.mrb[0].mxu0
  %v197 = vadd.f32 %v44, %v196
  %v198 = vpop.f32.mrb[0].mxu0
  %199 = vmatprep.mubr.f32.mxu0 0.0
  %200 = vmatmul.mubr.f32.gmra.mrb[0].mxu0 %v72
  %v201 = vpop.f32.mrb[0].mxu0
  %v202 = vadd.f32 %v44, %v201
  %v203 = vpop.f32.mrb[0].mxu0
  %204 = vmatprep.mubr.f32.mxu0 0.0
  %205 = vmatmul.mubr.f32.gmra.mrb[0].mxu0 %v75
  %v206 = vpop.f32.mrb[0].mxu0
  %v207 = vadd.f32 %v44, %v206
  %v208 = vpop.f32.mrb[0].mxu0
  %209 = vmatprep.mubr.f32.mxu0 0.0
  %210 = vmatmul.mubr.f32.gmra.mrb[0].mxu0 %v78
  %v211 = vpop.f32.mrb[0].mxu0
  %v212 = vadd.f32 %v44, %v211
  %v213 = vpop.f32.mrb[0].mxu0
  %214 = vmatprep.mubr.f32.mxu0 0.0
  %215 = vmatmul.mubr.f32.gmra.mrb[0].mxu0 %v81
  %v216 = vpop.f32.mrb[0].mxu0
  %v217 = vadd.f32 %v44, %v216
  %v218 = vpop.f32.mrb[0].mxu0
  %219 = vmatprep.mubr.f32.mxu0 0.0
  %220 = vmatmul.mubr.f32.gmra.mrb[0].mxu0 %v84
  %v221 = vpop.f32.mrb[0].mxu0
  %v222 = vadd.f32 %v44, %v221
  %v223 = vpop.f32.mrb[0].mxu0
  %224 = vmatprep.mubr.f32.mxu0 0.0
  %225 = vmatmul.mubr.f32.gmra.mrb[0].mxu0 %v87
  %v226 = vpop.f32.mrb[0].mxu0
  %v227 = vadd.f32 %v44, %v226
  %v228 = vpop.f32.mrb[0].mxu0
  %229 = vmatprep.mubr.f32.mxu0 0.0
  %230 = vmatmul.mubr.f32.gmra.mrb[0].mxu0 %v90
  %v231 = vpop.f32.mrb[0].mxu0
  %v232 = vadd.f32 %v44, %v231
  %v233 = vpop.f32.mrb[0].mxu0
  %234 = vmatprep.mubr.f32.mxu0 0.0
  %235 = vmatmul.mubr.f32.gmra.mrb[0].mxu0 %v93
  %v236 = vpop.f32.mrb[0].mxu0
  %v237 = vadd.f32 %v44, %v236
  %v238 = vpop.f32.mrb[0].mxu0
  %239 = vdwg.mxu0
  %v240 = vmax.f32 %v162, 0.0
  %v241 = vmax.f32 %v167, 0.0
  %v242 = vmax.f32 %v172, 0.0
  %v243 = vmax.f32 %v177, 0.0
  %v244 = vmax.f32 %v182, 0.0
  %v245 = vmax.f32 %v187, 0.0
  %v246 = vmax.f32 %v192, 0.0
  %v247 = vmax.f32 %v197, 0.0
  %v248 = vmax.f32 %v202, 0.0
  %v249 = vmax.f32 %v207, 0.0
  %v250 = vmax.f32 %v212, 0.0
  %v251 = vmax.f32 %v217, 0.0
  %v252 = vmax.f32 %v222, 0.0
  %v253 = vmax.f32 %v227, 0.0
  %v254 = vmax.f32 %v232, 0.0
  %v255 = vmax.f32 %v237, 0.0
  %256 = vst [vmem:[%s3] sm:$0xff] %v240
  %257 = vst [vmem:[%s3 + $0x8] sm:$0xff] %v241
  %258 = vst [vmem:[%s3 + $0x10] sm:$0xff] %v242
  %259 = vst [vmem:[%s3 + $0x18] sm:$0xff] %v243
  %260 = vst [vmem:[%s3 + $0x20] sm:$0xff] %v244
  %261 = vst [vmem:[%s3 + $0x28] sm:$0xff] %v245
  %262 = vst [vmem:[%s3 + $0x30] sm:$0xff] %v246
  %263 = vst [vmem:[%s3 + $0x38] sm:$0xff] %v247
  %264 = vst [vmem:[%s3 + $0x40] sm:$0xff] %v248
  %265 = vst [vmem:[%s3 + $0x48] sm:$0xff] %v249
  %266 = vst [vmem:[%s3 + $0x50] sm:$0xff] %v250
  %267 = vst [vmem:[%s3 + $0x58] sm:$0xff] %v251
  %268 = vst [vmem:[%s3 + $0x60] sm:$0xff] %v252
  %269 = vst [vmem:[%s3 + $0x68] sm:$0xff] %v253
  %270 = vst [vmem:[%s3 + $0x70] sm:$0xff] %v254
  %271 = vst [vmem:[%s3 + $0x78] sm:$0xff] %v255
  // Predicated region
  $region14: #{inception_v3_module_d.7} parent=0 // pred_check
    _
  $region15: #{inception_v3_module_d.7} parent=0 // pred_check_branch
    %273 = sbr.rel (0) target = $region17
  $region16: #{inception_v3_module_d.7} parent=0 // pred_region
    _
  $region17: #{inception_v3_module_d.7} parent=0 // pred_fallthru
    _
  // Predicated region
  $region18: #{inception_v3_module_d.7} parent=0 // pred_check
    _
  $region19: #{inception_v3_module_d.7} parent=0 // pred_check_branch
    %275 = sbr.rel (0) target = $region21
  $region20: #{inception_v3_module_d.7} parent=0 // pred_region
    _
  $region21: #{inception_v3_module_d.7} parent=0 // pred_fallthru
    _

// kernel: inception_v3_module_d.11
$region0: #{inception_v3_module_d.11}
  #allocation0 [shape = 'u32[]', space=smem, size = 0x4, offset = 0x4, fixed_abs, tag = 'smem constant byte address 0x4 - core index']
  #allocation1 [shape = 'u32[144,128]{1,0:T(1,128)}', space=vmem, size = 0x12000, scoped, tag = 'internal scratch']
  %s0 = inlined_call_operand.vmem [shape: f32[9,128,4], index: 0, kind: input, shape index: {}]
  %s1 = inlined_call_operand.vmem [shape: f32[128,4], index: 1, kind: output, shape index: {}]
  %s2 = sld [smem:[#allocation0]]
  $region14: #{inception_v3_module_d.11} parent=0
    _
  %s4 = ssub.s32 1, %s2
  %s5 = scalar_select 0, %s4, %s2
  // Predicated region
  $region2: #{inception_v3_module_d.11} parent=0 // pred_check
    _
  $region3: #{inception_v3_module_d.11} parent=0 // pred_check_branch
    %7 = sbr.rel (0) target = $region5
  $region4: #{inception_v3_module_d.11} parent=0 // pred_region
    _
  $region5: #{inception_v3_module_d.11} parent=0 // pred_fallthru
    _
  %v8 = vld [vmem:[%s0] sm:$0xff]
  %v9 = vld [vmem:[%s0 + $0x8] sm:$0xff]
  %v10 = vld [vmem:[%s0 + $0x10] sm:$0xff]
  %v11 = vld [vmem:[%s0 + $0x18] sm:$0xff]
  %v12 = vld [vmem:[%s0 + $0x20] sm:$0xff]
  %v13 = vld [vmem:[%s0 + $0x28] sm:$0xff]
  %v14 = vld [vmem:[%s0 + $0x30] sm:$0xff]
  %v15 = vld [vmem:[%s0 + $0x38] sm:$0xff]
  %v16 = vld [vmem:[%s0 + $0x40] sm:$0xff]
  %v17 = vld [vmem:[%s0 + $0x48] sm:$0xff]
  %v18 = vld [vmem:[%s0 + $0x50] sm:$0xff]
  %v19 = vld [vmem:[%s0 + $0x58] sm:$0xff]
  %v20 = vld [vmem:[%s0 + $0x60] sm:$0xff]
  %v21 = vld [vmem:[%s0 + $0x68] sm:$0xff]
  %v22 = vld [vmem:[%s0 + $0x70] sm:$0xff]
  %v23 = vld [vmem:[%s0 + $0x78] sm:$0xff]
  %v24 = vld [vmem:[%s0 + $0x80] sm:$0xff]
  %v25 = vld [vmem:[%s0 + $0x88] sm:$0xff]
  %v26 = vld [vmem:[%s0 + $0x90] sm:$0xff]
  %v27 = vld [vmem:[%s0 + $0x98] sm:$0xff]
  %v28 = vld [vmem:[%s0 + $0xa0] sm:$0xff]
  %v29 = vld [vmem:[%s0 + $0xa8] sm:$0xff]
  %v30 = vld [vmem:[%s0 + $0xb0] sm:$0xff]
  %v31 = vld [vmem:[%s0 + $0xb8] sm:$0xff]
  %v32 = vld [vmem:[%s0 + $0xc0] sm:$0xff]
  %v33 = vld [vmem:[%s0 + $0xc8] sm:$0xff]
  %v34 = vld [vmem:[%s0 + $0xd0] sm:$0xff]
  %v35 = vld [vmem:[%s0 + $0xd8] sm:$0xff]
  %v36 = vld [vmem:[%s0 + $0xe0] sm:$0xff]
  %v37 = vld [vmem:[%s0 + $0xe8] sm:$0xff]
  %v38 = vld [vmem:[%s0 + $0xf0] sm:$0xff]
  %v39 = vld [vmem:[%s0 + $0xf8] sm:$0xff]
  %v40 = vld [vmem:[%s0 + $0x100] sm:$0xff]
  %v41 = vld [vmem:[%s0 + $0x108] sm:$0xff]
  %v42 = vld [vmem:[%s0 + $0x110] sm:$0xff]
  %v43 = vld [vmem:[%s0 + $0x118] sm:$0xff]
  %v44 = vld [vmem:[%s0 + $0x120] sm:$0xff]
  %v45 = vld [vmem:[%s0 + $0x128] sm:$0xff]
  %v46 = vld [vmem:[%s0 + $0x130] sm:$0xff]
  %v47 = vld [vmem:[%s0 + $0x138] sm:$0xff]
  %v48 = vld [vmem:[%s0 + $0x140] sm:$0xff]
  %v49 = vld [vmem:[%s0 + $0x148] sm:$0xff]
  %v50 = vld [vmem:[%s0 + $0x150] sm:$0xff]
  %v51 = vld [vmem:[%s0 + $0x158] sm:$0xff]
  %v52 = vld [vmem:[%s0 + $0x160] sm:$0xff]
  %v53 = vld [vmem:[%s0 + $0x168] sm:$0xff]
  %v54 = vld [vmem:[%s0 + $0x170] sm:$0xff]
  %v55 = vld [vmem:[%s0 + $0x178] sm:$0xff]
  %v56 = vld [vmem:[%s0 + $0x180] sm:$0xff]
  %v57 = vld [vmem:[%s0 + $0x188] sm:$0xff]
  %v58 = vld [vmem:[%s0 + $0x190] sm:$0xff]
  %v59 = vld [vmem:[%s0 + $0x198] sm:$0xff]
  %v60 = vld [vmem:[%s0 + $0x1a0] sm:$0xff]
  %v61 = vld [vmem:[%s0 + $0x1a8] sm:$0xff]
  %v62 = vld [vmem:[%s0 + $0x1b0] sm:$0xff]
  %v63 = vld [vmem:[%s0 + $0x1b8] sm:$0xff]
  %v64 = vld [vmem:[%s0 + $0x1c0] sm:$0xff]
  %v65 = vld [vmem:[%s0 + $0x1c8] sm:$0xff]
  %v66 = vld [vmem:[%s0 + $0x1d0] sm:$0xff]
  %v67 = vld [vmem:[%s0 + $0x1d8] sm:$0xff]
  %v68 = vld [vmem:[%s0 + $0x1e0] sm:$0xff]
  %v69 = vld [vmem:[%s0 + $0x1e8] sm:$0xff]
  %v70 = vld [vmem:[%s0 + $0x1f0] sm:$0xff]
  %v71 = vld [vmem:[%s0 + $0x1f8] sm:$0xff]
  %v72 = vld [vmem:[%s0 + $0x200] sm:$0xff]
  %v73 = vld [vmem:[%s0 + $0x208] sm:$0xff]
  %v74 = vld [vmem:[%s0 + $0x210] sm:$0xff]
  %v75 = vld [vmem:[%s0 + $0x218] sm:$0xff]
  %v76 = vld [vmem:[%s0 + $0x220] sm:$0xff]
  %v77 = vld [vmem:[%s0 + $0x228] sm:$0xff]
  %v78 = vld [vmem:[%s0 + $0x230] sm:$0xff]
  %v79 = vld [vmem:[%s0 + $0x238] sm:$0xff]
  %v80 = vld [vmem:[%s0 + $0x240] sm:$0xff]
  %v81 = vld [vmem:[%s0 + $0x248] sm:$0xff]
  %v82 = vld [vmem:[%s0 + $0x250] sm:$0xff]
  %v83 = vld [vmem:[%s0 + $0x258] sm:$0xff]
  %v84 = vld [vmem:[%s0 + $0x260] sm:$0xff]
  %v85 = vld [vmem:[%s0 + $0x268] sm:$0xff]
  %v86 = vld [vmem:[%s0 + $0x270] sm:$0xff]
  %v87 = vld [vmem:[%s0 + $0x278] sm:$0xff]
  %v88 = vld [vmem:[%s0 + $0x280] sm:$0xff]
  %v89 = vld [vmem:[%s0 + $0x288] sm:$0xff]
  %v90 = vld [vmem:[%s0 + $0x290] sm:$0xff]
  %v91 = vld [vmem:[%s0 + $0x298] sm:$0xff]
  %v92 = vld [vmem:[%s0 + $0x2a0] sm:$0xff]
  %v93 = vld [vmem:[%s0 + $0x2a8] sm:$0xff]
  %v94 = vld [vmem:[%s0 + $0x2b0] sm:$0xff]
  %v95 = vld [vmem:[%s0 + $0x2b8] sm:$0xff]
  %v96 = vld [vmem:[%s0 + $0x2c0] sm:$0xff]
  %v97 = vld [vmem:[%s0 + $0x2c8] sm:$0xff]
  %v98 = vld [vmem:[%s0 + $0x2d0] sm:$0xff]
  %v99 = vld [vmem:[%s0 + $0x2d8] sm:$0xff]
  %v100 = vld [vmem:[%s0 + $0x2e0] sm:$0xff]
  %v101 = vld [vmem:[%s0 + $0x2e8] sm:$0xff]
  %v102 = vld [vmem:[%s0 + $0x2f0] sm:$0xff]
  %v103 = vld [vmem:[%s0 + $0x2f8] sm:$0xff]
  %v104 = vld [vmem:[%s0 + $0x300] sm:$0xff]
  %v105 = vld [vmem:[%s0 + $0x308] sm:$0xff]
  %v106 = vld [vmem:[%s0 + $0x310] sm:$0xff]
  %v107 = vld [vmem:[%s0 + $0x318] sm:$0xff]
  %v108 = vld [vmem:[%s0 + $0x320] sm:$0xff]
  %v109 = vld [vmem:[%s0 + $0x328] sm:$0xff]
  %v110 = vld [vmem:[%s0 + $0x330] sm:$0xff]
  %v111 = vld [vmem:[%s0 + $0x338] sm:$0xff]
  %v112 = vld [vmem:[%s0 + $0x340] sm:$0xff]
  %v113 = vld [vmem:[%s0 + $0x348] sm:$0xff]
  %v114 = vld [vmem:[%s0 + $0x350] sm:$0xff]
  %v115 = vld [vmem:[%s0 + $0x358] sm:$0xff]
  %v116 = vld [vmem:[%s0 + $0x360] sm:$0xff]
  %v117 = vld [vmem:[%s0 + $0x368] sm:$0xff]
  %v118 = vld [vmem:[%s0 + $0x370] sm:$0xff]
  %v119 = vld [vmem:[%s0 + $0x378] sm:$0xff]
  %v120 = vld [vmem:[%s0 + $0x380] sm:$0xff]
  %v121 = vld [vmem:[%s0 + $0x388] sm:$0xff]
  %v122 = vld [vmem:[%s0 + $0x390] sm:$0xff]
  %v123 = vld [vmem:[%s0 + $0x398] sm:$0xff]
  %v124 = vld [vmem:[%s0 + $0x3a0] sm:$0xff]
  %v125 = vld [vmem:[%s0 + $0x3a8] sm:$0xff]
  %v126 = vld [vmem:[%s0 + $0x3b0] sm:$0xff]
  %v127 = vld [vmem:[%s0 + $0x3b8] sm:$0xff]
  %v128 = vld [vmem:[%s0 + $0x3c0] sm:$0xff]
  %v129 = vld [vmem:[%s0 + $0x3c8] sm:$0xff]
  %v130 = vld [vmem:[%s0 + $0x3d0] sm:$0xff]
  %v131 = vld [vmem:[%s0 + $0x3d8] sm:$0xff]
  %v132 = vld [vmem:[%s0 + $0x3e0] sm:$0xff]
  %v133 = vld [vmem:[%s0 + $0x3e8] sm:$0xff]
  %v134 = vld [vmem:[%s0 + $0x3f0] sm:$0xff]
  %v135 = vld [vmem:[%s0 + $0x3f8] sm:$0xff]
  %v136 = vld [vmem:[%s0 + $0x400] sm:$0xff]
  %v137 = vld [vmem:[%s0 + $0x408] sm:$0xff]
  %v138 = vld [vmem:[%s0 + $0x410] sm:$0xff]
  %v139 = vld [vmem:[%s0 + $0x418] sm:$0xff]
  %v140 = vld [vmem:[%s0 + $0x420] sm:$0xff]
  %v141 = vld [vmem:[%s0 + $0x428] sm:$0xff]
  %v142 = vld [vmem:[%s0 + $0x430] sm:$0xff]
  %v143 = vld [vmem:[%s0 + $0x438] sm:$0xff]
  %v144 = vld [vmem:[%s0 + $0x440] sm:$0xff]
  %v145 = vld [vmem:[%s0 + $0x448] sm:$0xff]
  %v146 = vld [vmem:[%s0 + $0x450] sm:$0xff]
  %v147 = vld [vmem:[%s0 + $0x458] sm:$0xff]
  %v148 = vld [vmem:[%s0 + $0x460] sm:$0xff]
  %v149 = vld [vmem:[%s0 + $0x468] sm:$0xff]
  %v150 = vld [vmem:[%s0 + $0x470] sm:$0xff]
  %v151 = vld [vmem:[%s0 + $0x478] sm:$0xff]
  %vm152 = vcmask 31744
  %v153 = vsel %vm152, %v8, -inf
  %v154 = vsel %vm152, %v24, -inf
  %v155 = vmax.f32 %v153, %v154
  %v156 = vsel %vm152, %v40, -inf
  %v157 = vmax.f32 %v155, %v156
  %v158 = vsel %vm152, %v56, -inf
  %v159 = vmax.f32 %v157, %v158
  %v160 = vsel %vm152, %v72, -inf
  %v161 = vmax.f32 %v159, %v160
  %v162 = vsel %vm152, %v88, -inf
  %v163 = vmax.f32 %v161, %v162
  %v164 = vsel %vm152, %v104, -inf
  %v165 = vmax.f32 %v163, %v164
  %v166 = vsel %vm152, %v120, -inf
  %v167 = vmax.f32 %v165, %v166
  %v168 = vsel %vm152, %v136, -inf
  %v169 = vmax.f32 %v167, %v168
  %v170 = vsel %vm152, %v9, -inf
  %v171 = vsel %vm152, %v25, -inf
  %v172 = vmax.f32 %v170, %v171
  %v173 = vsel %vm152, %v41, -inf
  %v174 = vmax.f32 %v172, %v173
  %v175 = vsel %vm152, %v57, -inf
  %v176 = vmax.f32 %v174, %v175
  %v177 = vsel %vm152, %v73, -inf
  %v178 = vmax.f32 %v176, %v177
  %v179 = vsel %vm152, %v89, -inf
  %v180 = vmax.f32 %v178, %v179
  %v181 = vsel %vm152, %v105, -inf
  %v182 = vmax.f32 %v180, %v181
  %v183 = vsel %vm152, %v121, -inf
  %v184 = vmax.f32 %v182, %v183
  %v185 = vsel %vm152, %v137, -inf
  %v186 = vmax.f32 %v184, %v185
  %v187 = vsel %vm152, %v10, -inf
  %v188 = vsel %vm152, %v26, -inf
  %v189 = vmax.f32 %v187, %v188
  %v190 = vsel %vm152, %v42, -inf
  %v191 = vmax.f32 %v189, %v190
  %v192 = vsel %vm152, %v58, -inf
  %v193 = vmax.f32 %v191, %v192
  %v194 = vsel %vm152, %v74, -inf
  %v195 = vmax.f32 %v193, %v194
  %v196 = vsel %vm152, %v90, -inf
  %v197 = vmax.f32 %v195, %v196
  %v198 = vsel %vm152, %v106, -inf
  %v199 = vmax.f32 %v197, %v198
  %v200 = vsel %vm152, %v122, -inf
  %v201 = vmax.f32 %v199, %v200
  %v202 = vsel %vm152, %v138, -inf
  %v203 = vmax.f32 %v201, %v202
  %v204 = vsel %vm152, %v11, -inf
  %v205 = vsel %vm152, %v27, -inf
  %v206 = vmax.f32 %v204, %v205
  %v207 = vsel %vm152, %v43, -inf
  %v208 = vmax.f32 %v206, %v207
  %v209 = vsel %vm152, %v59, -inf
  %v210 = vmax.f32 %v208, %v209
  %v211 = vsel %vm152, %v75, -inf
  %v212 = vmax.f32 %v210, %v211
  %v213 = vsel %vm152, %v91, -inf
  %v214 = vmax.f32 %v212, %v213
  %v215 = vsel %vm152, %v107, -inf
  %v216 = vmax.f32 %v214, %v215
  %v217 = vsel %vm152, %v123, -inf
  %v218 = vmax.f32 %v216, %v217
  %v219 = vsel %vm152, %v139, -inf
  %v220 = vmax.f32 %v218, %v219
  %v221 = vsel %vm152, %v12, -inf
  %v222 = vsel %vm152, %v28, -inf
  %v223 = vmax.f32 %v221, %v222
  %v224 = vsel %vm152, %v44, -inf
  %v225 = vmax.f32 %v223, %v224
  %v226 = vsel %vm152, %v60, -inf
  %v227 = vmax.f32 %v225, %v226
  %v228 = vsel %vm152, %v76, -inf
  %v229 = vmax.f32 %v227, %v228
  %v230 = vsel %vm152, %v92, -inf
  %v231 = vmax.f32 %v229, %v230
  %v232 = vsel %vm152, %v108, -inf
  %v233 = vmax.f32 %v231, %v232
  %v234 = vsel %vm152, %v124, -inf
  %v235 = vmax.f32 %v233, %v234
  %v236 = vsel %vm152, %v140, -inf
  %v237 = vmax.f32 %v235, %v236
  %v238 = vsel %vm152, %v13, -inf
  %v239 = vsel %vm152, %v29, -inf
  %v240 = vmax.f32 %v238, %v239
  %v241 = vsel %vm152, %v45, -inf
  %v242 = vmax.f32 %v240, %v241
  %v243 = vsel %vm152, %v61, -inf
  %v244 = vmax.f32 %v242, %v243
  %v245 = vsel %vm152, %v77, -inf
  %v246 = vmax.f32 %v244, %v245
  %v247 = vsel %vm152, %v93, -inf
  %v248 = vmax.f32 %v246, %v247
  %v249 = vsel %vm152, %v109, -inf
  %v250 = vmax.f32 %v248, %v249
  %v251 = vsel %vm152, %v125, -inf
  %v252 = vmax.f32 %v250, %v251
  %v253 = vsel %vm152, %v141, -inf
  %v254 = vmax.f32 %v252, %v253
  %v255 = vsel %vm152, %v14, -inf
  %v256 = vsel %vm152, %v30, -inf
  %v257 = vmax.f32 %v255, %v256
  %v258 = vsel %vm152, %v46, -inf
  %v259 = vmax.f32 %v257, %v258
  %v260 = vsel %vm152, %v62, -inf
  %v261 = vmax.f32 %v259, %v260
  %v262 = vsel %vm152, %v78, -inf
  %v263 = vmax.f32 %v261, %v262
  %v264 = vsel %vm152, %v94, -inf
  %v265 = vmax.f32 %v263, %v264
  %v266 = vsel %vm152, %v110, -inf
  %v267 = vmax.f32 %v265, %v266
  %v268 = vsel %vm152, %v126, -inf
  %v269 = vmax.f32 %v267, %v268
  %v270 = vsel %vm152, %v142, -inf
  %v271 = vmax.f32 %v269, %v270
  %v272 = vsel %vm152, %v15, -inf
  %v273 = vsel %vm152, %v31, -inf
  %v274 = vmax.f32 %v272, %v273
  %v275 = vsel %vm152, %v47, -inf
  %v276 = vmax.f32 %v274, %v275
  %v277 = vsel %vm152, %v63, -inf
  %v278 = vmax.f32 %v276, %v277
  %v279 = vsel %vm152, %v79, -inf
  %v280 = vmax.f32 %v278, %v279
  %v281 = vsel %vm152, %v95, -inf
  %v282 = vmax.f32 %v280, %v281
  %v283 = vsel %vm152, %v111, -inf
  %v284 = vmax.f32 %v282, %v283
  %v285 = vsel %vm152, %v127, -inf
  %v286 = vmax.f32 %v284, %v285
  %v287 = vsel %vm152, %v143, -inf
  %v288 = vmax.f32 %v286, %v287
  %v289 = vsel %vm152, %v16, -inf
  %v290 = vsel %vm152, %v32, -inf
  %v291 = vmax.f32 %v289, %v290
  %v292 = vsel %vm152, %v48, -inf
  %v293 = vmax.f32 %v291, %v292
  %v294 = vsel %vm152, %v64, -inf
  %v295 = vmax.f32 %v293, %v294
  %v296 = vsel %vm152, %v80, -inf
  %v297 = vmax.f32 %v295, %v296
  %v298 = vsel %vm152, %v96, -inf
  %v299 = vmax.f32 %v297, %v298
  %v300 = vsel %vm152, %v112, -inf
  %v301 = vmax.f32 %v299, %v300
  %v302 = vsel %vm152, %v128, -inf
  %v303 = vmax.f32 %v301, %v302
  %v304 = vsel %vm152, %v144, -inf
  %v305 = vmax.f32 %v303, %v304
  %v306 = vsel %vm152, %v17, -inf
  %v307 = vsel %vm152, %v33, -inf
  %v308 = vmax.f32 %v306, %v307
  %v309 = vsel %vm152, %v49, -inf
  %v310 = vmax.f32 %v308, %v309
  %v311 = vsel %vm152, %v65, -inf
  %v312 = vmax.f32 %v310, %v311
  %v313 = vsel %vm152, %v81, -inf
  %v314 = vmax.f32 %v312, %v313
  %v315 = vsel %vm152, %v97, -inf
  %v316 = vmax.f32 %v314, %v315
  %v317 = vsel %vm152, %v113, -inf
  %v318 = vmax.f32 %v316, %v317
  %v319 = vsel %vm152, %v129, -inf
  %v320 = vmax.f32 %v318, %v319
  %v321 = vsel %vm152, %v145, -inf
  %v322 = vmax.f32 %v320, %v321
  %v323 = vsel %vm152, %v18, -inf
  %v324 = vsel %vm152, %v34, -inf
  %v325 = vmax.f32 %v323, %v324
  %v326 = vsel %vm152, %v50, -inf
  %v327 = vmax.f32 %v325, %v326
  %v328 = vsel %vm152, %v66, -inf
  %v329 = vmax.f32 %v327, %v328
  %v330 = vsel %vm152, %v82, -inf
  %v331 = vmax.f32 %v329, %v330
  %v332 = vsel %vm152, %v98, -inf
  %v333 = vmax.f32 %v331, %v332
  %v334 = vsel %vm152, %v114, -inf
  %v335 = vmax.f32 %v333, %v334
  %v336 = vsel %vm152, %v130, -inf
  %v337 = vmax.f32 %v335, %v336
  %v338 = vsel %vm152, %v146, -inf
  %v339 = vmax.f32 %v337, %v338
  %v340 = vsel %vm152, %v19, -inf
  %v341 = vsel %vm152, %v35, -inf
  %v342 = vmax.f32 %v340, %v341
  %v343 = vsel %vm152, %v51, -inf
  %v344 = vmax.f32 %v342, %v343
  %v345 = vsel %vm152, %v67, -inf
  %v346 = vmax.f32 %v344, %v345
  %v347 = vsel %vm152, %v83, -inf
  %v348 = vmax.f32 %v346, %v347
  %v349 = vsel %vm152, %v99, -inf
  %v350 = vmax.f32 %v348, %v349
  %v351 = vsel %vm152, %v115, -inf
  %v352 = vmax.f32 %v350, %v351
  %v353 = vsel %vm152, %v131, -inf
  %v354 = vmax.f32 %v352, %v353
  %v355 = vsel %vm152, %v147, -inf
  %v356 = vmax.f32 %v354, %v355
  %v357 = vsel %vm152, %v20, -inf
  %v358 = vsel %vm152, %v36, -inf
  %v359 = vmax.f32 %v357, %v358
  %v360 = vsel %vm152, %v52, -inf
  %v361 = vmax.f32 %v359, %v360
  %v362 = vsel %vm152, %v68, -inf
  %v363 = vmax.f32 %v361, %v362
  %v364 = vsel %vm152, %v84, -inf
  %v365 = vmax.f32 %v363, %v364
  %v366 = vsel %vm152, %v100, -inf
  %v367 = vmax.f32 %v365, %v366
  %v368 = vsel %vm152, %v116, -inf
  %v369 = vmax.f32 %v367, %v368
  %v370 = vsel %vm152, %v132, -inf
  %v371 = vmax.f32 %v369, %v370
  %v372 = vsel %vm152, %v148, -inf
  %v373 = vmax.f32 %v371, %v372
  %v374 = vsel %vm152, %v21, -inf
  %v375 = vsel %vm152, %v37, -inf
  %v376 = vmax.f32 %v374, %v375
  %v377 = vsel %vm152, %v53, -inf
  %v378 = vmax.f32 %v376, %v377
  %v379 = vsel %vm152, %v69, -inf
  %v380 = vmax.f32 %v378, %v379
  %v381 = vsel %vm152, %v85, -inf
  %v382 = vmax.f32 %v380, %v381
  %v383 = vsel %vm152, %v101, -inf
  %v384 = vmax.f32 %v382, %v383
  %v385 = vsel %vm152, %v117, -inf
  %v386 = vmax.f32 %v384, %v385
  %v387 = vsel %vm152, %v133, -inf
  %v388 = vmax.f32 %v386, %v387
  %v389 = vsel %vm152, %v149, -inf
  %v390 = vmax.f32 %v388, %v389
  %v391 = vsel %vm152, %v22, -inf
  %v392 = vsel %vm152, %v38, -inf
  %v393 = vmax.f32 %v391, %v392
  %v394 = vsel %vm152, %v54, -inf
  %v395 = vmax.f32 %v393, %v394
  %v396 = vsel %vm152, %v70, -inf
  %v397 = vmax.f32 %v395, %v396
  %v398 = vsel %vm152, %v86, -inf
  %v399 = vmax.f32 %v397, %v398
  %v400 = vsel %vm152, %v102, -inf
  %v401 = vmax.f32 %v399, %v400
  %v402 = vsel %vm152, %v118, -inf
  %v403 = vmax.f32 %v401, %v402
  %v404 = vsel %vm152, %v134, -inf
  %v405 = vmax.f32 %v403, %v404
  %v406 = vsel %vm152, %v150, -inf
  %v407 = vmax.f32 %v405, %v406
  %v408 = vsel %vm152, %v23, -inf
  %v409 = vsel %vm152, %v39, -inf
  %v410 = vmax.f32 %v408, %v409
  %v411 = vsel %vm152, %v55, -inf
  %v412 = vmax.f32 %v410, %v411
  %v413 = vsel %vm152, %v71, -inf
  %v414 = vmax.f32 %v412, %v413
  %v415 = vsel %vm152, %v87, -inf
  %v416 = vmax.f32 %v414, %v415
  %v417 = vsel %vm152, %v103, -inf
  %v418 = vmax.f32 %v416, %v417
  %v419 = vsel %vm152, %v119, -inf
  %v420 = vmax.f32 %v418, %v419
  %v421 = vsel %vm152, %v135, -inf
  %v422 = vmax.f32 %v420, %v421
  %v423 = vsel %vm152, %v151, -inf
  %v424 = vmax.f32 %v422, %v423
  %425 = vst.msk [vmem:[%s1] sm:$0xff] %vm152, %v169
  %426 = vst.msk [vmem:[%s1 + $0x8] sm:$0xff] %vm152, %v186
  %427 = vst.msk [vmem:[%s1 + $0x10] sm:$0xff] %vm152, %v203
  %428 = vst.msk [vmem:[%s1 + $0x18] sm:$0xff] %vm152, %v220
  %429 = vst.msk [vmem:[%s1 + $0x20] sm:$0xff] %vm152, %v237
  %430 = vst.msk [vmem:[%s1 + $0x28] sm:$0xff] %vm152, %v254
  %431 = vst.msk [vmem:[%s1 + $0x30] sm:$0xff] %vm152, %v271
  %432 = vst.msk [vmem:[%s1 + $0x38] sm:$0xff] %vm152, %v288
  %433 = vst.msk [vmem:[%s1 + $0x40] sm:$0xff] %vm152, %v305
  %434 = vst.msk [vmem:[%s1 + $0x48] sm:$0xff] %vm152, %v322
  %435 = vst.msk [vmem:[%s1 + $0x50] sm:$0xff] %vm152, %v339
  %436 = vst.msk [vmem:[%s1 + $0x58] sm:$0xff] %vm152, %v356
  %437 = vst.msk [vmem:[%s1 + $0x60] sm:$0xff] %vm152, %v373
  %438 = vst.msk [vmem:[%s1 + $0x68] sm:$0xff] %vm152, %v390
  %439 = vst.msk [vmem:[%s1 + $0x70] sm:$0xff] %vm152, %v407
  %440 = vst.msk [vmem:[%s1 + $0x78] sm:$0xff] %vm152, %v424
  // Predicated region
  $region6: #{inception_v3_module_d.11} parent=0 // pred_check
    _
  $region7: #{inception_v3_module_d.11} parent=0 // pred_check_branch
    %442 = sbr.rel (0) target = $region9
  $region8: #{inception_v3_module_d.11} parent=0 // pred_region
    _
  $region9: #{inception_v3_module_d.11} parent=0 // pred_fallthru
    _
  // Predicated region
  $region10: #{inception_v3_module_d.11} parent=0 // pred_check
    _
  $region11: #{inception_v3_module_d.11} parent=0 // pred_check_branch
    %444 = sbr.rel (0) target = $region13
  $region12: #{inception_v3_module_d.11} parent=0 // pred_region
    _
  $region13: #{inception_v3_module_d.11} parent=0 // pred_fallthru
    _

// kernel: inception_v3_module_d.9
$region0: #{inception_v3_module_d.9}
  #allocation0 [shape = 'u32[]', space=smem, size = 0x4, offset = 0x4, fixed_abs, tag = 'smem constant byte address 0x4 - core index']
  #allocation1 [shape = 'u32[144,128]{1,0:T(1,128)}', space=vmem, size = 0x12000, scoped, tag = 'internal scratch']
  %s0 = inlined_call_operand.vmem [shape: f32[512,72], index: 0, kind: input, shape index: {}]
  %s1 = inlined_call_operand.vmem [shape: f32[72,128], index: 1, kind: input, shape index: {}]
  %s2 = inlined_call_operand.vmem [shape: f32[1,128], index: 2, kind: input, shape index: {}]
  %s3 = inlined_call_operand.vmem [shape: f32[512,128], index: 3, kind: output, shape index: {}]
  %s4 = sld [smem:[#allocation0]]
  $region22: #{inception_v3_module_d.9} parent=0
    _
  %s6 = ssub.s32 1, %s4
  %s7 = scalar_select 0, %s6, %s4
  // Predicated region
  $region2: #{inception_v3_module_d.9} parent=0 // pred_check
    _
  $region3: #{inception_v3_module_d.9} parent=0 // pred_check_branch
    %9 = sbr.rel (0) target = $region5
  $region4: #{inception_v3_module_d.9} parent=0 // pred_region
    _
  $region5: #{inception_v3_module_d.9} parent=0 // pred_fallthru
    _
  // Predicated region
  $region6: #{inception_v3_module_d.9} parent=0 // pred_check
    _
  $region7: #{inception_v3_module_d.9} parent=0 // pred_check_branch
    %11 = sbr.rel (0) target = $region9
  $region8: #{inception_v3_module_d.9} parent=0 // pred_region
    _
  $region9: #{inception_v3_module_d.9} parent=0 // pred_fallthru
    _
  // Predicated region
  $region10: #{inception_v3_module_d.9} parent=0 // pred_check
    _
  $region11: #{inception_v3_module_d.9} parent=0 // pred_check_branch
    %13 = sbr.rel (0) target = $region13
  $region12: #{inception_v3_module_d.9} parent=0 // pred_region
    _
  $region13: #{inception_v3_module_d.9} parent=0 // pred_fallthru
    _
  %v14 = vld [vmem:[%s0] sm:$0xff]
  %v15 = vld [vmem:[%s0 + $0x8] sm:$0xff]
  %v16 = vld [vmem:[%s0 + $0x10] sm:$0xff]
  %v17 = vld [vmem:[%s0 + $0x18] sm:$0xff]
  %v18 = vld [vmem:[%s0 + $0x20] sm:$0xff]
  %v19 = vld [vmem:[%s0 + $0x28] sm:$0xff]
  %v20 = vld [vmem:[%s0 + $0x30] sm:$0xff]
  %v21 = vld [vmem:[%s0 + $0x38] sm:$0xff]
  %v22 = vld [vmem:[%s0 + $0x40] sm:$0xff]
  %v23 = vld [vmem:[%s0 + $0x48] sm:$0xff]
  %v24 = vld [vmem:[%s0 + $0x50] sm:$0xff]
  %v25 = vld [vmem:[%s0 + $0x58] sm:$0xff]
  %v26 = vld [vmem:[%s0 + $0x60] sm:$0xff]
  %v27 = vld [vmem:[%s0 + $0x68] sm:$0xff]
  %v28 = vld [vmem:[%s0 + $0x70] sm:$0xff]
  %v29 = vld [vmem:[%s0 + $0x78] sm:$0xff]
  %v30 = vld [vmem:[%s0 + $0x80] sm:$0xff]
  %v31 = vld [vmem:[%s0 + $0x88] sm:$0xff]
  %v32 = vld [vmem:[%s0 + $0x90] sm:$0xff]
  %v33 = vld [vmem:[%s0 + $0x98] sm:$0xff]
  %v34 = vld [vmem:[%s0 + $0xa0] sm:$0xff]
  %v35 = vld [vmem:[%s0 + $0xa8] sm:$0xff]
  %v36 = vld [vmem:[%s0 + $0xb0] sm:$0xff]
  %v37 = vld [vmem:[%s0 + $0xb8] sm:$0xff]
  %v38 = vld [vmem:[%s0 + $0xc0] sm:$0xff]
  %v39 = vld [vmem:[%s0 + $0xc8] sm:$0xff]
  %v40 = vld [vmem:[%s0 + $0xd0] sm:$0xff]
  %v41 = vld [vmem:[%s0 + $0xd8] sm:$0xff]
  %v42 = vld [vmem:[%s0 + $0xe0] sm:$0xff]
  %v43 = vld [vmem:[%s0 + $0xe8] sm:$0xff]
  %v44 = vld [vmem:[%s0 + $0xf0] sm:$0xff]
  %v45 = vld [vmem:[%s0 + $0xf8] sm:$0xff]
  %v46 = vld [vmem:[%s0 + $0x100] sm:$0xff]
  %v47 = vld [vmem:[%s0 + $0x108] sm:$0xff]
  %v48 = vld [vmem:[%s0 + $0x110] sm:$0xff]
  %v49 = vld [vmem:[%s0 + $0x118] sm:$0xff]
  %v50 = vld [vmem:[%s0 + $0x120] sm:$0xff]
  %v51 = vld [vmem:[%s0 + $0x128] sm:$0xff]
  %v52 = vld [vmem:[%s0 + $0x130] sm:$0xff]
  %v53 = vld [vmem:[%s0 + $0x138] sm:$0xff]
  %v54 = vld [vmem:[%s0 + $0x140] sm:$0xff]
  %v55 = vld [vmem:[%s0 + $0x148] sm:$0xff]
  %v56 = vld [vmem:[%s0 + $0x150] sm:$0xff]
  %v57 = vld [vmem:[%s0 + $0x158] sm:$0xff]
  %v58 = vld [vmem:[%s0 + $0x160] sm:$0xff]
  %v59 = vld [vmem:[%s0 + $0x168] sm:$0xff]
  %v60 = vld [vmem:[%s0 + $0x170] sm:$0xff]
  %v61 = vld [vmem:[%s0 + $0x178] sm:$0xff]
  %v62 = vld [vmem:[%s0 + $0x180] sm:$0xff]
  %v63 = vld [vmem:[%s0 + $0x188] sm:$0xff]
  %v64 = vld [vmem:[%s0 + $0x190] sm:$0xff]
  %v65 = vld [vmem:[%s0 + $0x198] sm:$0xff]
  %v66 = vld [vmem:[%s0 + $0x1a0] sm:$0xff]
  %v67 = vld [vmem:[%s0 + $0x1a8] sm:$0xff]
  %v68 = vld [vmem:[%s0 + $0x1b0] sm:$0xff]
  %v69 = vld [vmem:[%s0 + $0x1b8] sm:$0xff]
  %v70 = vld [vmem:[%s0 + $0x1c0] sm:$0xff]
  %v71 = vld [vmem:[%s0 + $0x1c8] sm:$0xff]
  %v72 = vld [vmem:[%s0 + $0x1d0] sm:$0xff]
  %v73 = vld [vmem:[%s0 + $0x1d8] sm:$0xff]
  %v74 = vld [vmem:[%s0 + $0x1e0] sm:$0xff]
  %v75 = vld [vmem:[%s0 + $0x1e8] sm:$0xff]
  %v76 = vld [vmem:[%s0 + $0x1f0] sm:$0xff]
  %v77 = vld [vmem:[%s0 + $0x1f8] sm:$0xff]
  %v78 = vld [vmem:[%s1] sm:$0xff]
  %v79 = vld [vmem:[%s1 + $0x8] sm:$0xff]
  %v80 = vld [vmem:[%s1 + $0x10] sm:$0xff]
  %v81 = vld [vmem:[%s1 + $0x18] sm:$0xff]
  %v82 = vld [vmem:[%s1 + $0x20] sm:$0xff]
  %v83 = vld [vmem:[%s1 + $0x28] sm:$0xff]
  %v84 = vld [vmem:[%s1 + $0x30] sm:$0xff]
  %v85 = vld [vmem:[%s1 + $0x38] sm:$0xff]
  %v86 = vld [vmem:[%s1 + $0x40] sm:$0xff]
  %v87 = vld [vmem:[%s2] sm:$0x1]
  %v89 = vlaneseq
  %v90 = vshrl.u32 %v89, 7
  %v91 = vsub.s32 0, %v90
  %v92 = vrot.slane %v87, %v91
  %vm94 = vcmask 588800
  %v96 = vsel %vm94, %v14, 0
  %v99 = vsel %vm94, %v15, 0
  %v102 = vsel %vm94, %v16, 0
  %v105 = vsel %vm94, %v17, 0
  %v108 = vsel %vm94, %v18, 0
  %v111 = vsel %vm94, %v19, 0
  %v114 = vsel %vm94, %v20, 0
  %v117 = vsel %vm94, %v21, 0
  %v120 = vsel %vm94, %v22, 0
  %v123 = vsel %vm94, %v23, 0
  %v126 = vsel %vm94, %v24, 0
  %v129 = vsel %vm94, %v25, 0
  %v132 = vsel %vm94, %v26, 0
  %v135 = vsel %vm94, %v27, 0
  %v138 = vsel %vm94, %v28, 0
  %v141 = vsel %vm94, %v29, 0
  %v144 = vsel %vm94, %v30, 0
  %v147 = vsel %vm94, %v31, 0
  %v150 = vsel %vm94, %v32, 0
  %v153 = vsel %vm94, %v33, 0
  %v156 = vsel %vm94, %v34, 0
  %v159 = vsel %vm94, %v35, 0
  %v162 = vsel %vm94, %v36, 0
  %v165 = vsel %vm94, %v37, 0
  %v168 = vsel %vm94, %v38, 0
  %v171 = vsel %vm94, %v39, 0
  %v174 = vsel %vm94, %v40, 0
  %v177 = vsel %vm94, %v41, 0
  %v180 = vsel %vm94, %v42, 0
  %v183 = vsel %vm94, %v43, 0
  %v186 = vsel %vm94, %v44, 0
  %v189 = vsel %vm94, %v45, 0
  %v192 = vsel %vm94, %v46, 0
  %v195 = vsel %vm94, %v47, 0
  %v198 = vsel %vm94, %v48, 0
  %v201 = vsel %vm94, %v49, 0
  %v204 = vsel %vm94, %v50, 0
  %v207 = vsel %vm94, %v51, 0
  %v210 = vsel %vm94, %v52, 0
  %v213 = vsel %vm94, %v53, 0
  %v216 = vsel %vm94, %v54, 0
  %v219 = vsel %vm94, %v55, 0
  %v222 = vsel %vm94, %v56, 0
  %v225 = vsel %vm94, %v57, 0
  %v228 = vsel %vm94, %v58, 0
  %v231 = vsel %vm94, %v59, 0
  %v234 = vsel %vm94, %v60, 0
  %v237 = vsel %vm94, %v61, 0
  %v240 = vsel %vm94, %v62, 0
  %v243 = vsel %vm94, %v63, 0
  %v246 = vsel %vm94, %v64, 0
  %v249 = vsel %vm94, %v65, 0
  %v252 = vsel %vm94, %v66, 0
  %v255 = vsel %vm94, %v67, 0
  %v258 = vsel %vm94, %v68, 0
  %v261 = vsel %vm94, %v69, 0
  %v264 = vsel %vm94, %v70, 0
  %v267 = vsel %vm94, %v71, 0
  %v270 = vsel %vm94, %v72, 0
  %v273 = vsel %vm94, %v73, 0
  %v276 = vsel %vm94, %v74, 0
  %v279 = vsel %vm94, %v75, 0
  %v282 = vsel %vm94, %v76, 0
  %v285 = vsel %vm94, %v77, 0
  %287 = vmatprep.subr.mxu0 0.0
  %288 = vmatpush1.msra.mxu0 %v78
  %289 = vmatprep.subr.mxu0 0.0
  %290 = vmatpush1.msra.mxu0 %v79
  %291 = vmatprep.subr.mxu0 0.0
  %292 = vmatpush1.msra.mxu0 %v80
  %293 = vmatprep.subr.mxu0 0.0
  %294 = vmatpush1.msra.mxu0 %v81
  %295 = vmatprep.subr.mxu0 0.0
  %296 = vmatpush1.msra.mxu0 %v82
  %297 = vmatprep.subr.mxu0 0.0
  %298 = vmatpush1.msra.mxu0 %v83
  %299 = vmatprep.subr.mxu0 0.0
  %300 = vmatpush1.msra.mxu0 %v84
  %301 = vmatprep.subr.mxu0 0.0
  %302 = vmatpush1.msra.mxu0 %v85
  %303 = vmatprep.subr.mxu0 0.0
  %304 = vmatpush1.msra.mxu0 %v86
  %305 = vmatprep.subr.mxu0 0.0
  %306 = vmatpush1.msra.mxu0 0.0
  %307 = vmatprep.subr.mxu0 0.0
  %308 = vmatpush1.msra.mxu0 0.0
  %309 = vmatprep.subr.mxu0 0.0
  %310 = vmatpush1.msra.mxu0 0.0
  %311 = vmatprep.subr.mxu0 0.0
  %312 = vmatpush1.msra.mxu0 0.0
  %313 = vmatprep.subr.mxu0 0.0
  %314 = vmatpush1.msra.mxu0 0.0
  %315 = vmatprep.subr.mxu0 0.0
  %316 = vmatpush1.msra.mxu0 0.0
  %317 = vmatprep.subr.mxu0 0.0
  %318 = vmatpush1.msra.mxu0 0.0
  %319 = vmatprep.subr.mxu0 0.0
  %320 = vmatpush1.msra.mxu0 0.0
  %321 = vmatprep.subr.mxu0 0.0
  %322 = vmatpush1.msra.mxu0 0.0
  %323 = vmatprep.subr.mxu0 0.0
  %324 = vmatpush1.msra.mxu0 0.0
  %325 = vmatprep.subr.mxu0 0.0
  %326 = vmatpush1.msra.mxu0 0.0
  %327 = vmatprep.subr.mxu0 0.0
  %328 = vmatpush1.msra.mxu0 0.0
  %329 = vmatprep.subr.mxu0 0.0
  %330 = vmatpush1.msra.mxu0 0.0
  %331 = vmatprep.subr.mxu0 0.0
  %332 = vmatpush1.msra.mxu0 0.0
  %333 = vmatprep.subr.mxu0 0.0
  %334 = vmatpush1.msra.mxu0 0.0
  %335 = vmatprep.subr.mxu0 0.0
  %336 = vmatpush1.msra.mxu0 0.0
  %337 = vmatprep.subr.mxu0 0.0
  %338 = vmatpush1.msra.mxu0 0.0
  %339 = vmatprep.subr.mxu0 0.0
  %340 = vmatpush1.msra.mxu0 0.0
  %341 = vmatprep.subr.mxu0 0.0
  %342 = vmatpush1.msra.mxu0 0.0
  %343 = vmatprep.subr.mxu0 0.0
  %344 = vmatpush1.msra.mxu0 0.0
  %345 = vmatprep.subr.mxu0 0.0
  %346 = vmatpush1.msra.mxu0 0.0
  %347 = vmatprep.subr.mxu0 0.0
  %348 = vmatpush1.msra.mxu0 0.0
  %349 = vmatprep.subr.mxu0 0.0
  %350 = vmatpush1.msra.mxu0 0.0
  %351 = vmatprep.mubr.f32.mxu0 0.0
  %352 = vmatmul.mubr.f32.gmra.mrb[0].mxu0 %v96
  %v353 = vpop.f32.mrb[0].mxu0
  %v354 = vadd.f32 %v92, %v353
  %v355 = vpop.f32.mrb[0].mxu0
  %356 = vmatprep.mubr.f32.mxu0 0.0
  %357 = vmatmul.mubr.f32.gmra.mrb[0].mxu0 %v99
  %v358 = vpop.f32.mrb[0].mxu0
  %v359 = vadd.f32 %v92, %v358
  %v360 = vpop.f32.mrb[0].mxu0
  %361 = vmatprep.mubr.f32.mxu0 0.0
  %362 = vmatmul.mubr.f32.gmra.mrb[0].mxu0 %v102
  %v363 = vpop.f32.mrb[0].mxu0
  %v364 = vadd.f32 %v92, %v363
  %v365 = vpop.f32.mrb[0].mxu0
  %366 = vmatprep.mubr.f32.mxu0 0.0
  %367 = vmatmul.mubr.f32.gmra.mrb[0].mxu0 %v105
  %v368 = vpop.f32.mrb[0].mxu0
  %v369 = vadd.f32 %v92, %v368
  %v370 = vpop.f32.mrb[0].mxu0
  %371 = vmatprep.mubr.f32.mxu0 0.0
  %372 = vmatmul.mubr.f32.gmra.mrb[0].mxu0 %v108
  %v373 = vpop.f32.mrb[0].mxu0
  %v374 = vadd.f32 %v92, %v373
  %v375 = vpop.f32.mrb[0].mxu0
  %376 = vmatprep.mubr.f32.mxu0 0.0
  %377 = vmatmul.mubr.f32.gmra.mrb[0].mxu0 %v111
  %v378 = vpop.f32.mrb[0].mxu0
  %v379 = vadd.f32 %v92, %v378
  %v380 = vpop.f32.mrb[0].mxu0
  %381 = vmatprep.mubr.f32.mxu0 0.0
  %382 = vmatmul.mubr.f32.gmra.mrb[0].mxu0 %v114
  %v383 = vpop.f32.mrb[0].mxu0
  %v384 = vadd.f32 %v92, %v383
  %v385 = vpop.f32.mrb[0].mxu0
  %386 = vmatprep.mubr.f32.mxu0 0.0
  %387 = vmatmul.mubr.f32.gmra.mrb[0].mxu0 %v117
  %v388 = vpop.f32.mrb[0].mxu0
  %v389 = vadd.f32 %v92, %v388
  %v390 = vpop.f32.mrb[0].mxu0
  %391 = vmatprep.mubr.f32.mxu0 0.0
  %392 = vmatmul.mubr.f32.gmra.mrb[0].mxu0 %v120
  %v393 = vpop.f32.mrb[0].mxu0
  %v394 = vadd.f32 %v92, %v393
  %v395 = vpop.f32.mrb[0].mxu0
  %396 = vmatprep.mubr.f32.mxu0 0.0
  %397 = vmatmul.mubr.f32.gmra.mrb[0].mxu0 %v123
  %v398 = vpop.f32.mrb[0].mxu0
  %v399 = vadd.f32 %v92, %v398
  %v400 = vpop.f32.mrb[0].mxu0
  %401 = vmatprep.mubr.f32.mxu0 0.0
  %402 = vmatmul.mubr.f32.gmra.mrb[0].mxu0 %v126
  %v403 = vpop.f32.mrb[0].mxu0
  %v404 = vadd.f32 %v92, %v403
  %v405 = vpop.f32.mrb[0].mxu0
  %406 = vmatprep.mubr.f32.mxu0 0.0
  %407 = vmatmul.mubr.f32.gmra.mrb[0].mxu0 %v129
  %v408 = vpop.f32.mrb[0].mxu0
  %v409 = vadd.f32 %v92, %v408
  %v410 = vpop.f32.mrb[0].mxu0
  %411 = vmatprep.mubr.f32.mxu0 0.0
  %412 = vmatmul.mubr.f32.gmra.mrb[0].mxu0 %v132
  %v413 = vpop.f32.mrb[0].mxu0
  %v414 = vadd.f32 %v92, %v413
  %v415 = vpop.f32.mrb[0].mxu0
  %416 = vmatprep.mubr.f32.mxu0 0.0
  %417 = vmatmul.mubr.f32.gmra.mrb[0].mxu0 %v135
  %v418 = vpop.f32.mrb[0].mxu0
  %v419 = vadd.f32 %v92, %v418
  %v420 = vpop.f32.mrb[0].mxu0
  %421 = vmatprep.mubr.f32.mxu0 0.0
  %422 = vmatmul.mubr.f32.gmra.mrb[0].mxu0 %v138
  %v423 = vpop.f32.mrb[0].mxu0
  %v424 = vadd.f32 %v92, %v423
  %v425 = vpop.f32.mrb[0].mxu0
  %426 = vmatprep.mubr.f32.mxu0 0.0
  %427 = vmatmul.mubr.f32.gmra.mrb[0].mxu0 %v141
  %v428 = vpop.f32.mrb[0].mxu0
  %v429 = vadd.f32 %v92, %v428
  %v430 = vpop.f32.mrb[0].mxu0
  %431 = vmatprep.mubr.f32.mxu0 0.0
  %432 = vmatmul.mubr.f32.gmra.mrb[0].mxu0 %v144
  %v433 = vpop.f32.mrb[0].mxu0
  %v434 = vadd.f32 %v92, %v433
  %v435 = vpop.f32.mrb[0].mxu0
  %436 = vmatprep.mubr.f32.mxu0 0.0
  %437 = vmatmul.mubr.f32.gmra.mrb[0].mxu0 %v147
  %v438 = vpop.f32.mrb[0].mxu0
  %v439 = vadd.f32 %v92, %v438
  %v440 = vpop.f32.mrb[0].mxu0
  %441 = vmatprep.mubr.f32.mxu0 0.0
  %442 = vmatmul.mubr.f32.gmra.mrb[0].mxu0 %v150
  %v443 = vpop.f32.mrb[0].mxu0
  %v444 = vadd.f32 %v92, %v443
  %v445 = vpop.f32.mrb[0].mxu0
  %446 = vmatprep.mubr.f32.mxu0 0.0
  %447 = vmatmul.mubr.f32.gmra.mrb[0].mxu0 %v153
  %v448 = vpop.f32.mrb[0].mxu0
  %v449 = vadd.f32 %v92, %v448
  %v450 = vpop.f32.mrb[0].mxu0
  %451 = vmatprep.mubr.f32.mxu0 0.0
  %452 = vmatmul.mubr.f32.gmra.mrb[0].mxu0 %v156
  %v453 = vpop.f32.mrb[0].mxu0
  %v454 = vadd.f32 %v92, %v453
  %v455 = vpop.f32.mrb[0].mxu0
  %456 = vmatprep.mubr.f32.mxu0 0.0
  %457 = vmatmul.mubr.f32.gmra.mrb[0].mxu0 %v159
  %v458 = vpop.f32.mrb[0].mxu0
  %v459 = vadd.f32 %v92, %v458
  %v460 = vpop.f32.mrb[0].mxu0
  %461 = vmatprep.mubr.f32.mxu0 0.0
  %462 = vmatmul.mubr.f32.gmra.mrb[0].mxu0 %v162
  %v463 = vpop.f32.mrb[0].mxu0
  %v464 = vadd.f32 %v92, %v463
  %v465 = vpop.f32.mrb[0].mxu0
  %466 = vmatprep.mubr.f32.mxu0 0.0
  %467 = vmatmul.mubr.f32.gmra.mrb[0].mxu0 %v165
  %v468 = vpop.f32.mrb[0].mxu0
  %v469 = vadd.f32 %v92, %v468
  %v470 = vpop.f32.mrb[0].mxu0
  %471 = vmatprep.mubr.f32.mxu0 0.0
  %472 = vmatmul.mubr.f32.gmra.mrb[0].mxu0 %v168
  %v473 = vpop.f32.mrb[0].mxu0
  %v474 = vadd.f32 %v92, %v473
  %v475 = vpop.f32.mrb[0].mxu0
  %476 = vmatprep.mubr.f32.mxu0 0.0
  %477 = vmatmul.mubr.f32.gmra.mrb[0].mxu0 %v171
  %v478 = vpop.f32.mrb[0].mxu0
  %v479 = vadd.f32 %v92, %v478
  %v480 = vpop.f32.mrb[0].mxu0
  %481 = vmatprep.mubr.f32.mxu0 0.0
  %482 = vmatmul.mubr.f32.gmra.mrb[0].mxu0 %v174
  %v483 = vpop.f32.mrb[0].mxu0
  %v484 = vadd.f32 %v92, %v483
  %v485 = vpop.f32.mrb[0].mxu0
  %486 = vmatprep.mubr.f32.mxu0 0.0
  %487 = vmatmul.mubr.f32.gmra.mrb[0].mxu0 %v177
  %v488 = vpop.f32.mrb[0].mxu0
  %v489 = vadd.f32 %v92, %v488
  %v490 = vpop.f32.mrb[0].mxu0
  %491 = vmatprep.mubr.f32.mxu0 0.0
  %492 = vmatmul.mubr.f32.gmra.mrb[0].mxu0 %v180
  %v493 = vpop.f32.mrb[0].mxu0
  %v494 = vadd.f32 %v92, %v493
  %v495 = vpop.f32.mrb[0].mxu0
  %496 = vmatprep.mubr.f32.mxu0 0.0
  %497 = vmatmul.mubr.f32.gmra.mrb[0].mxu0 %v183
  %v498 = vpop.f32.mrb[0].mxu0
  %v499 = vadd.f32 %v92, %v498
  %v500 = vpop.f32.mrb[0].mxu0
  %501 = vmatprep.mubr.f32.mxu0 0.0
  %502 = vmatmul.mubr.f32.gmra.mrb[0].mxu0 %v186
  %v503 = vpop.f32.mrb[0].mxu0
  %v504 = vadd.f32 %v92, %v503
  %v505 = vpop.f32.mrb[0].mxu0
  %506 = vmatprep.mubr.f32.mxu0 0.0
  %507 = vmatmul.mubr.f32.gmra.mrb[0].mxu0 %v189
  %v508 = vpop.f32.mrb[0].mxu0
  %v509 = vadd.f32 %v92, %v508
  %v510 = vpop.f32.mrb[0].mxu0
  %511 = vmatprep.mubr.f32.mxu0 0.0
  %512 = vmatmul.mubr.f32.gmra.mrb[0].mxu0 %v192
  %v513 = vpop.f32.mrb[0].mxu0
  %v514 = vadd.f32 %v92, %v513
  %v515 = vpop.f32.mrb[0].mxu0
  %516 = vmatprep.mubr.f32.mxu0 0.0
  %517 = vmatmul.mubr.f32.gmra.mrb[0].mxu0 %v195
  %v518 = vpop.f32.mrb[0].mxu0
  %v519 = vadd.f32 %v92, %v518
  %v520 = vpop.f32.mrb[0].mxu0
  %521 = vmatprep.mubr.f32.mxu0 0.0
  %522 = vmatmul.mubr.f32.gmra.mrb[0].mxu0 %v198
  %v523 = vpop.f32.mrb[0].mxu0
  %v524 = vadd.f32 %v92, %v523
  %v525 = vpop.f32.mrb[0].mxu0
  %526 = vmatprep.mubr.f32.mxu0 0.0
  %527 = vmatmul.mubr.f32.gmra.mrb[0].mxu0 %v201
  %v528 = vpop.f32.mrb[0].mxu0
  %v529 = vadd.f32 %v92, %v528
  %v530 = vpop.f32.mrb[0].mxu0
  %531 = vmatprep.mubr.f32.mxu0 0.0
  %532 = vmatmul.mubr.f32.gmra.mrb[0].mxu0 %v204
  %v533 = vpop.f32.mrb[0].mxu0
  %v534 = vadd.f32 %v92, %v533
  %v535 = vpop.f32.mrb[0].mxu0
  %536 = vmatprep.mubr.f32.mxu0 0.0
  %537 = vmatmul.mubr.f32.gmra.mrb[0].mxu0 %v207
  %v538 = vpop.f32.mrb[0].mxu0
  %v539 = vadd.f32 %v92, %v538
  %v540 = vpop.f32.mrb[0].mxu0
  %541 = vmatprep.mubr.f32.mxu0 0.0
  %542 = vmatmul.mubr.f32.gmra.mrb[0].mxu0 %v210
  %v543 = vpop.f32.mrb[0].mxu0
  %v544 = vadd.f32 %v92, %v543
  %v545 = vpop.f32.mrb[0].mxu0
  %546 = vmatprep.mubr.f32.mxu0 0.0
  %547 = vmatmul.mubr.f32.gmra.mrb[0].mxu0 %v213
  %v548 = vpop.f32.mrb[0].mxu0
  %v549 = vadd.f32 %v92, %v548
  %v550 = vpop.f32.mrb[0].mxu0
  %551 = vmatprep.mubr.f32.mxu0 0.0
  %552 = vmatmul.mubr.f32.gmra.mrb[0].mxu0 %v216
  %v553 = vpop.f32.mrb[0].mxu0
  %v554 = vadd.f32 %v92, %v553
  %v555 = vpop.f32.mrb[0].mxu0
  %556 = vmatprep.mubr.f32.mxu0 0.0
  %557 = vmatmul.mubr.f32.gmra.mrb[0].mxu0 %v219
  %v558 = vpop.f32.mrb[0].mxu0
  %v559 = vadd.f32 %v92, %v558
  %v560 = vpop.f32.mrb[0].mxu0
  %561 = vmatprep.mubr.f32.mxu0 0.0
  %562 = vmatmul.mubr.f32.gmra.mrb[0].mxu0 %v222
  %v563 = vpop.f32.mrb[0].mxu0
  %v564 = vadd.f32 %v92, %v563
  %v565 = vpop.f32.mrb[0].mxu0
  %566 = vmatprep.mubr.f32.mxu0 0.0
  %567 = vmatmul.mubr.f32.gmra.mrb[0].mxu0 %v225
  %v568 = vpop.f32.mrb[0].mxu0
  %v569 = vadd.f32 %v92, %v568
  %v570 = vpop.f32.mrb[0].mxu0
  %571 = vmatprep.mubr.f32.mxu0 0.0
  %572 = vmatmul.mubr.f32.gmra.mrb[0].mxu0 %v228
  %v573 = vpop.f32.mrb[0].mxu0
  %v574 = vadd.f32 %v92, %v573
  %v575 = vpop.f32.mrb[0].mxu0
  %576 = vmatprep.mubr.f32.mxu0 0.0
  %577 = vmatmul.mubr.f32.gmra.mrb[0].mxu0 %v231
  %v578 = vpop.f32.mrb[0].mxu0
  %v579 = vadd.f32 %v92, %v578
  %v580 = vpop.f32.mrb[0].mxu0
  %581 = vmatprep.mubr.f32.mxu0 0.0
  %582 = vmatmul.mubr.f32.gmra.mrb[0].mxu0 %v234
  %v583 = vpop.f32.mrb[0].mxu0
  %v584 = vadd.f32 %v92, %v583
  %v585 = vpop.f32.mrb[0].mxu0
  %586 = vmatprep.mubr.f32.mxu0 0.0
  %587 = vmatmul.mubr.f32.gmra.mrb[0].mxu0 %v237
  %v588 = vpop.f32.mrb[0].mxu0
  %v589 = vadd.f32 %v92, %v588
  %v590 = vpop.f32.mrb[0].mxu0
  %591 = vmatprep.mubr.f32.mxu0 0.0
  %592 = vmatmul.mubr.f32.gmra.mrb[0].mxu0 %v240
  %v593 = vpop.f32.mrb[0].mxu0
  %v594 = vadd.f32 %v92, %v593
  %v595 = vpop.f32.mrb[0].mxu0
  %596 = vmatprep.mubr.f32.mxu0 0.0
  %597 = vmatmul.mubr.f32.gmra.mrb[0].mxu0 %v243
  %v598 = vpop.f32.mrb[0].mxu0
  %v599 = vadd.f32 %v92, %v598
  %v600 = vpop.f32.mrb[0].mxu0
  %601 = vmatprep.mubr.f32.mxu0 0.0
  %602 = vmatmul.mubr.f32.gmra.mrb[0].mxu0 %v246
  %v603 = vpop.f32.mrb[0].mxu0
  %v604 = vadd.f32 %v92, %v603
  %v605 = vpop.f32.mrb[0].mxu0
  %606 = vmatprep.mubr.f32.mxu0 0.0
  %607 = vmatmul.mubr.f32.gmra.mrb[0].mxu0 %v249
  %v608 = vpop.f32.mrb[0].mxu0
  %v609 = vadd.f32 %v92, %v608
  %v610 = vpop.f32.mrb[0].mxu0
  %611 = vmatprep.mubr.f32.mxu0 0.0
  %612 = vmatmul.mubr.f32.gmra.mrb[0].mxu0 %v252
  %v613 = vpop.f32.mrb[0].mxu0
  %v614 = vadd.f32 %v92, %v613
  %v615 = vpop.f32.mrb[0].mxu0
  %616 = vmatprep.mubr.f32.mxu0 0.0
  %617 = vmatmul.mubr.f32.gmra.mrb[0].mxu0 %v255
  %v618 = vpop.f32.mrb[0].mxu0
  %v619 = vadd.f32 %v92, %v618
  %v620 = vpop.f32.mrb[0].mxu0
  %621 = vmatprep.mubr.f32.mxu0 0.0
  %622 = vmatmul.mubr.f32.gmra.mrb[0].mxu0 %v258
  %v623 = vpop.f32.mrb[0].mxu0
  %v624 = vadd.f32 %v92, %v623
  %v625 = vpop.f32.mrb[0].mxu0
  %626 = vmatprep.mubr.f32.mxu0 0.0
  %627 = vmatmul.mubr.f32.gmra.mrb[0].mxu0 %v261
  %v628 = vpop.f32.mrb[0].mxu0
  %v629 = vadd.f32 %v92, %v628
  %v630 = vpop.f32.mrb[0].mxu0
  %631 = vmatprep.mubr.f32.mxu0 0.0
  %632 = vmatmul.mubr.f32.gmra.mrb[0].mxu0 %v264
  %v633 = vpop.f32.mrb[0].mxu0
  %v634 = vadd.f32 %v92, %v633
  %v635 = vpop.f32.mrb[0].mxu0
  %636 = vmatprep.mubr.f32.mxu0 0.0
  %637 = vmatmul.mubr.f32.gmra.mrb[0].mxu0 %v267
  %v638 = vpop.f32.mrb[0].mxu0
  %v639 = vadd.f32 %v92, %v638
  %v640 = vpop.f32.mrb[0].mxu0
  %641 = vmatprep.mubr.f32.mxu0 0.0
  %642 = vmatmul.mubr.f32.gmra.mrb[0].mxu0 %v270
  %v643 = vpop.f32.mrb[0].mxu0
  %v644 = vadd.f32 %v92, %v643
  %v645 = vpop.f32.mrb[0].mxu0
  %646 = vmatprep.mubr.f32.mxu0 0.0
  %647 = vmatmul.mubr.f32.gmra.mrb[0].mxu0 %v273
  %v648 = vpop.f32.mrb[0].mxu0
  %v649 = vadd.f32 %v92, %v648
  %v650 = vpop.f32.mrb[0].mxu0
  %651 = vmatprep.mubr.f32.mxu0 0.0
  %652 = vmatmul.mubr.f32.gmra.mrb[0].mxu0 %v276
  %v653 = vpop.f32.mrb[0].mxu0
  %v654 = vadd.f32 %v92, %v653
  %v655 = vpop.f32.mrb[0].mxu0
  %656 = vmatprep.mubr.f32.mxu0 0.0
  %657 = vmatmul.mubr.f32.gmra.mrb[0].mxu0 %v279
  %v658 = vpop.f32.mrb[0].mxu0
  %v659 = vadd.f32 %v92, %v658
  %v660 = vpop.f32.mrb[0].mxu0
  %661 = vmatprep.mubr.f32.mxu0 0.0
  %662 = vmatmul.mubr.f32.gmra.mrb[0].mxu0 %v282
  %v663 = vpop.f32.mrb[0].mxu0
  %v664 = vadd.f32 %v92, %v663
  %v665 = vpop.f32.mrb[0].mxu0
  %666 = vmatprep.mubr.f32.mxu0 0.0
  %667 = vmatmul.mubr.f32.gmra.mrb[0].mxu0 %v285
  %v668 = vpop.f32.mrb[0].mxu0
  %v669 = vadd.f32 %v92, %v668
  %v670 = vpop.f32.mrb[0].mxu0
  %671 = vdwg.mxu0
  %v672 = vmax.f32 %v354, 0.0
  %v673 = vmax.f32 %v359, 0.0
  %v674 = vmax.f32 %v364, 0.0
  %v675 = vmax.f32 %v369, 0.0
  %v676 = vmax.f32 %v374, 0.0
  %v677 = vmax.f32 %v379, 0.0
  %v678 = vmax.f32 %v384, 0.0
  %v679 = vmax.f32 %v389, 0.0
  %v680 = vmax.f32 %v394, 0.0
  %v681 = vmax.f32 %v399, 0.0
  %v682 = vmax.f32 %v404, 0.0
  %v683 = vmax.f32 %v409, 0.0
  %v684 = vmax.f32 %v414, 0.0
  %v685 = vmax.f32 %v419, 0.0
  %v686 = vmax.f32 %v424, 0.0
  %v687 = vmax.f32 %v429, 0.0
  %v688 = vmax.f32 %v434, 0.0
  %v689 = vmax.f32 %v439, 0.0
  %v690 = vmax.f32 %v444, 0.0
  %v691 = vmax.f32 %v449, 0.0
  %v692 = vmax.f32 %v454, 0.0
  %v693 = vmax.f32 %v459, 0.0
  %v694 = vmax.f32 %v464, 0.0
  %v695 = vmax.f32 %v469, 0.0
  %v696 = vmax.f32 %v474, 0.0
  %v697 = vmax.f32 %v479, 0.0
  %v698 = vmax.f32 %v484, 0.0
  %v699 = vmax.f32 %v489, 0.0
  %v700 = vmax.f32 %v494, 0.0
  %v701 = vmax.f32 %v499, 0.0
  %v702 = vmax.f32 %v504, 0.0
  %v703 = vmax.f32 %v509, 0.0
  %v704 = vmax.f32 %v514, 0.0
  %v705 = vmax.f32 %v519, 0.0
  %v706 = vmax.f32 %v524, 0.0
  %v707 = vmax.f32 %v529, 0.0
  %v708 = vmax.f32 %v534, 0.0
  %v709 = vmax.f32 %v539, 0.0
  %v710 = vmax.f32 %v544, 0.0
  %v711 = vmax.f32 %v549, 0.0
  %v712 = vmax.f32 %v554, 0.0
  %v713 = vmax.f32 %v559, 0.0
  %v714 = vmax.f32 %v564, 0.0
  %v715 = vmax.f32 %v569, 0.0
  %v716 = vmax.f32 %v574, 0.0
  %v717 = vmax.f32 %v579, 0.0
  %v718 = vmax.f32 %v584, 0.0
  %v719 = vmax.f32 %v589, 0.0
  %v720 = vmax.f32 %v594, 0.0
  %v721 = vmax.f32 %v599, 0.0
  %v722 = vmax.f32 %v604, 0.0
  %v723 = vmax.f32 %v609, 0.0
  %v724 = vmax.f32 %v614, 0.0
  %v725 = vmax.f32 %v619, 0.0
  %v726 = vmax.f32 %v624, 0.0
  %v727 = vmax.f32 %v629, 0.0
  %v728 = vmax.f32 %v634, 0.0
  %v729 = vmax.f32 %v639, 0.0
  %v730 = vmax.f32 %v644, 0.0
  %v731 = vmax.f32 %v649, 0.0
  %v732 = vmax.f32 %v654, 0.0
  %v733 = vmax.f32 %v659, 0.0
  %v734 = vmax.f32 %v664, 0.0
  %v735 = vmax.f32 %v669, 0.0
  %736 = vst [vmem:[%s3] sm:$0xff] %v672
  %737 = vst [vmem:[%s3 + $0x8] sm:$0xff] %v673
  %738 = vst [vmem:[%s3 + $0x10] sm:$0xff] %v674
  %739 = vst [vmem:[%s3 + $0x18] sm:$0xff] %v675
  %740 = vst [vmem:[%s3 + $0x20] sm:$0xff] %v676
  %741 = vst [vmem:[%s3 + $0x28] sm:$0xff] %v677
  %742 = vst [vmem:[%s3 + $0x30] sm:$0xff] %v678
  %743 = vst [vmem:[%s3 + $0x38] sm:$0xff] %v679
  %744 = vst [vmem:[%s3 + $0x40] sm:$0xff] %v680
  %745 = vst [vmem:[%s3 + $0x48] sm:$0xff] %v681
  %746 = vst [vmem:[%s3 + $0x50] sm:$0xff] %v682
  %747 = vst [vmem:[%s3 + $0x58] sm:$0xff] %v683
  %748 = vst [vmem:[%s3 + $0x60] sm:$0xff] %v684
  %749 = vst [vmem:[%s3 + $0x68] sm:$0xff] %v685
  %750 = vst [vmem:[%s3 + $0x70] sm:$0xff] %v686
  %751 = vst [vmem:[%s3 + $0x78] sm:$0xff] %v687
  %752 = vst [vmem:[%s3 + $0x80] sm:$0xff] %v688
  %753 = vst [vmem:[%s3 + $0x88] sm:$0xff] %v689
  %754 = vst [vmem:[%s3 + $0x90] sm:$0xff] %v690
  %755 = vst [vmem:[%s3 + $0x98] sm:$0xff] %v691
  %756 = vst [vmem:[%s3 + $0xa0] sm:$0xff] %v692
  %757 = vst [vmem:[%s3 + $0xa8] sm:$0xff] %v693
  %758 = vst [vmem:[%s3 + $0xb0] sm:$0xff] %v694
  %759 = vst [vmem:[%s3 + $0xb8] sm:$0xff] %v695
  %760 = vst [vmem:[%s3 + $0xc0] sm:$0xff] %v696
  %761 = vst [vmem:[%s3 + $0xc8] sm:$0xff] %v697
  %762 = vst [vmem:[%s3 + $0xd0] sm:$0xff] %v698
  %763 = vst [vmem:[%s3 + $0xd8] sm:$0xff] %v699
  %764 = vst [vmem:[%s3 + $0xe0] sm:$0xff] %v700
  %765 = vst [vmem:[%s3 + $0xe8] sm:$0xff] %v701
  %766 = vst [vmem:[%s3 + $0xf0] sm:$0xff] %v702
  %767 = vst [vmem:[%s3 + $0xf8] sm:$0xff] %v703
  %768 = vst [vmem:[%s3 + $0x100] sm:$0xff] %v704
  %769 = vst [vmem:[%s3 + $0x108] sm:$0xff] %v705
  %770 = vst [vmem:[%s3 + $0x110] sm:$0xff] %v706
  %771 = vst [vmem:[%s3 + $0x118] sm:$0xff] %v707
  %772 = vst [vmem:[%s3 + $0x120] sm:$0xff] %v708
  %773 = vst [vmem:[%s3 + $0x128] sm:$0xff] %v709
  %774 = vst [vmem:[%s3 + $0x130] sm:$0xff] %v710
  %775 = vst [vmem:[%s3 + $0x138] sm:$0xff] %v711
  %776 = vst [vmem:[%s3 + $0x140] sm:$0xff] %v712
  %777 = vst [vmem:[%s3 + $0x148] sm:$0xff] %v713
  %778 = vst [vmem:[%s3 + $0x150] sm:$0xff] %v714
  %779 = vst [vmem:[%s3 + $0x158] sm:$0xff] %v715
  %780 = vst [vmem:[%s3 + $0x160] sm:$0xff] %v716
  %781 = vst [vmem:[%s3 + $0x168] sm:$0xff] %v717
  %782 = vst [vmem:[%s3 + $0x170] sm:$0xff] %v718
  %783 = vst [vmem:[%s3 + $0x178] sm:$0xff] %v719
  %784 = vst [vmem:[%s3 + $0x180] sm:$0xff] %v720
  %785 = vst [vmem:[%s3 + $0x188] sm:$0xff] %v721
  %786 = vst [vmem:[%s3 + $0x190] sm:$0xff] %v722
  %787 = vst [vmem:[%s3 + $0x198] sm:$0xff] %v723
  %788 = vst [vmem:[%s3 + $0x1a0] sm:$0xff] %v724
  %789 = vst [vmem:[%s3 + $0x1a8] sm:$0xff] %v725
  %790 = vst [vmem:[%s3 + $0x1b0] sm:$0xff] %v726
  %791 = vst [vmem:[%s3 + $0x1b8] sm:$0xff] %v727
  %792 = vst [vmem:[%s3 + $0x1c0] sm:$0xff] %v728
  %793 = vst [vmem:[%s3 + $0x1c8] sm:$0xff] %v729
  %794 = vst [vmem:[%s3 + $0x1d0] sm:$0xff] %v730
  %795 = vst [vmem:[%s3 + $0x1d8] sm:$0xff] %v731
  %796 = vst [vmem:[%s3 + $0x1e0] sm:$0xff] %v732
  %797 = vst [vmem:[%s3 + $0x1e8] sm:$0xff] %v733
  %798 = vst [vmem:[%s3 + $0x1f0] sm:$0xff] %v734
  %799 = vst [vmem:[%s3 + $0x1f8] sm:$0xff] %v735
  // Predicated region
  $region14: #{inception_v3_module_d.9} parent=0 // pred_check
    _
  $region15: #{inception_v3_module_d.9} parent=0 // pred_check_branch
    %801 = sbr.rel (0) target = $region17
  $region16: #{inception_v3_module_d.9} parent=0 // pred_region
    _
  $region17: #{inception_v3_module_d.9} parent=0 // pred_fallthru
    _
  // Predicated region
  $region18: #{inception_v3_module_d.9} parent=0 // pred_check
    _
  $region19: #{inception_v3_module_d.9} parent=0 // pred_check_branch
    %803 = sbr.rel (0) target = $region21
  $region20: #{inception_v3_module_d.9} parent=0 // pred_region
    _
  $region21: #{inception_v3_module_d.9} parent=0 // pred_fallthru
    _

</llo_original>
